<compile_context>
chip_gen: v5e
topology: v5e:2x2
jax: 0.10.0
libtpu: 0.0.40
codegen_flags: <defaults>
</compile_context>

<pallas_src>
import numpy as np

import jax
import jax.numpy as jnp
from jax.experimental import pallas as pl
from jax.experimental.pallas import tpu as pltpu


# ----------------------------------------------------------------------------
# Tree structure + level schedule (children strictly precede parents)
# ----------------------------------------------------------------------------
class Tree:
    def __init__(self, idx, children=()):
        self.idx = idx
        self.children = list(children)
        self.num_children = len(self.children)
        self.state = None


def compute_levels(root):
    """Group nodes by height (leaves = level 0)."""
    levels = {}

    def rec(node):
        lv = 0 if not node.children else 1 + max(rec(c) for c in node.children)
        levels.setdefault(lv, []).append(node)
        return lv

    rec(root)
    return [levels[k] for k in sorted(levels)]


def _ceil(x, m):
    return ((x + m - 1) // m) * m


# ----------------------------------------------------------------------------
# Single Pallas kernel: whole tree, one grid step per level.
# ----------------------------------------------------------------------------
def _mtreelstm_kernel(xsel_ref,    # (B, Sp)   one-hot row-gather for this level's nodes
                      xscat_ref,   # (Sp, B)   transpose of xsel (scatter back)
                      csel_ref,    # (B*K, Sp) one-hot row-gather for children (0 rows = pad)
                      x_ref,       # (Sp, In)  inputs (padded)
                      e_ref,       # (Sp, E)   edge inputs (padded)
                      wx4_ref,     # (In, 4H)  [wxi|wxo|wxu|fxw]
                      b4_ref,      # (1, 4H)   [bi|bo|bu|fxb+fhb]   (biases pre-summed)
                      wmx_ref,     # (E, H)
                      whf_ref,     # (H, 2H)   [wmh | fhw]
                      wh_ref,      # (H, H)
                      wiou_ref,    # (H, 3H)   [whi | who | whu]
                      outc_ref,    # (Sp, H)   output cell states
                      outh_ref,    # (Sp, H)   output hidden states
                      x4_sc,       # (Sp, 4H)  hoisted input projections (VMEM resident)
                      wm_sc,       # (Sp, H)   hoisted edge projections
                      c_sc,        # (Sp, H)   per-node cell state
                      h_sc):       # (Sp, H)   per-node hidden state
    f32 = jnp.float32
    lvl = pl.program_id(0)
    H = wh_ref.shape[0]
    B = xsel_ref.shape[0]
    BK = csel_ref.shape[0]
    K = BK // B

    # --- level 0: hoist all input/edge projections, zero the state ---------
    @pl.when(lvl == 0)
    def _init():
        x4_sc[...] = (jnp.dot(x_ref[...], wx4_ref[...],
                              preferred_element_type=f32) + b4_ref[...])
        wm_sc[...] = jnp.dot(e_ref[...], wmx_ref[...], preferred_element_type=f32)
        c_sc[...] = jnp.zeros_like(c_sc)
        h_sc[...] = jnp.zeros_like(h_sc)

    xsel = xsel_ref[...]                                               # (B, Sp)
    csel = csel_ref[...]                                               # (BK, Sp)

    # Gather this level's node rows and (zero-padded) child rows via matmul.
    xproj = jnp.dot(xsel, x4_sc[...], preferred_element_type=f32)      # (B, 4H)
    cc = jnp.dot(csel, c_sc[...], preferred_element_type=f32)          # (BK, H)
    ch = jnp.dot(csel, h_sc[...], preferred_element_type=f32)          # (BK, H)
    cwm = jnp.dot(csel, wm_sc[...], preferred_element_type=f32)        # (BK, H)

    # Packed child_h projection: [wmh(child_h) | fh_w(child_h)] (one matmul).
    hp = jnp.dot(ch, whf_ref[...], preferred_element_type=f32)         # (BK, 2H)
    wmh_p = hp[:, :H]
    fh_p = hp[:, H:]

    # m_k = wh( wmx(w_k) * wmh(h_k) )   per child row
    mk = jnp.dot(cwm * wmh_p, wh_ref[...], preferred_element_type=f32)  # (BK, H)

    # Static per-node segment-sum / broadcast selection matrices.
    rows = jax.lax.broadcasted_iota(jnp.int32, (B, BK), 0)
    cols = jax.lax.broadcasted_iota(jnp.int32, (B, BK), 1)
    S = ((cols >= rows * K) & (cols < (rows + 1) * K)).astype(f32)      # (B, BK)
    rows_t = jax.lax.broadcasted_iota(jnp.int32, (BK, B), 0)
    cols_t = jax.lax.broadcasted_iota(jnp.int32, (BK, B), 1)
    ST = ((rows_t >= cols_t * K) & (rows_t < (cols_t + 1) * K)).astype(f32)  # (BK, B)

    # child_h_sum = sum_k m_k   (per node)
    h_sum = jnp.dot(S, mk, preferred_element_type=f32)                  # (B, H)

    # iou = ioux(x) + iouh(child_h_sum)   (x part + both biases precomputed)
    iou = jnp.dot(h_sum, wiou_ref[...], preferred_element_type=f32) + xproj[:, :3 * H]
    i = jax.nn.sigmoid(iou[:, :H])
    o = jax.nn.sigmoid(iou[:, H:2 * H])
    u = jnp.tanh(iou[:, 2 * H:])

    # forget gates per child: f = sigmoid(fh(child_h) + fx(x) + fxb + fhb)
    fx_rows = jnp.dot(ST, xproj[:, 3 * H:], preferred_element_type=f32)  # (BK, H)
    f = jax.nn.sigmoid(fh_p + fx_rows)
    fc_sum = jnp.dot(S, f * cc, preferred_element_type=f32)              # (B, H)

    c_new = i * u + fc_sum                                               # (B, H)
    h_new = o * jnp.tanh(c_new)

    # Scatter new states back (each node's row is touched by exactly one level
    # and starts at 0, so accumulate-scatter via matmul is exact).
    c_sc[...] = c_sc[...] + jnp.dot(xscat_ref[...], c_new, preferred_element_type=f32)
    h_sc[...] = h_sc[...] + jnp.dot(xscat_ref[...], h_new, preferred_element_type=f32)

    @pl.when(lvl == pl.num_programs(0) - 1)
    def _finalize():
        outc_ref[...] = c_sc[...]
        outh_ref[...] = h_sc[...]


def mtreelstm_forward_pallas(packed, root, inputs, edge_inputs, hidden_size):
    """Returns (C, Hs): per-node cell / hidden states, shape (seq, H) each."""
    seq, In = inputs.shape
    E = edge_inputs.shape[1]
    H = hidden_size
    seq_pad = max(8, _ceil(seq, 8))

    levels = compute_levels(root)
    L = len(levels)
    B = max(8, _ceil(max(len(lv) for lv in levels), 8))       # nodes per level (padded)
    max_arity = max((nd.num_children for lv in levels for nd in lv), default=0)
    K = max(1, max_arity)                                      # children per node (padded)
    BK = B * K                                                 # B is a multiple of 8

    # Host-side static one-hot gather / scatter tables (tiny).
    xsel = np.zeros((L, B, seq_pad), np.float32)
    xscat = np.zeros((L, seq_pad, B), np.float32)
    csel = np.zeros((L, BK, seq_pad), np.float32)
    for l, nodes in enumerate(levels):
        for r, nd in enumerate(nodes):
            xsel[l, r, nd.idx] = 1.0
            xscat[l, nd.idx, r] = 1.0
            for k, chd in enumerate(nd.children):
                csel[l, r * K + k, chd.idx] = 1.0

    inputs_p = jnp.zeros((seq_pad, In), jnp.float32).at[:seq].set(inputs)
    edges_p = jnp.zeros((seq_pad, E), jnp.float32).at[:seq].set(edge_inputs)

    const2 = lambda l: (0, 0)   # weights / inputs / outputs stay VMEM resident

    out_c, out_h = pl.pallas_call(
        _mtreelstm_kernel,
        out_shape=(jax.ShapeDtypeStruct((seq_pad, H), jnp.float32),
                   jax.ShapeDtypeStruct((seq_pad, H), jnp.float32)),
        grid_spec=pltpu.PrefetchScalarGridSpec(
            num_scalar_prefetch=0,
            grid=(L,),
            in_specs=[
                pl.BlockSpec((None, B, seq_pad), lambda l: (l, 0, 0)),    # xsel
                pl.BlockSpec((None, seq_pad, B), lambda l: (l, 0, 0)),    # xscat
                pl.BlockSpec((None, BK, seq_pad), lambda l: (l, 0, 0)),   # csel
                pl.BlockSpec((seq_pad, In), const2),                      # inputs
                pl.BlockSpec((seq_pad, E), const2),                       # edge inputs
                pl.BlockSpec((In, 4 * H), const2),                        # wx4
                pl.BlockSpec((1, 4 * H), const2),                         # b4
                pl.BlockSpec((E, H), const2),                             # wmx
                pl.BlockSpec((H, 2 * H), const2),                         # whf
                pl.BlockSpec((H, H), const2),                             # wh
                pl.BlockSpec((H, 3 * H), const2),                         # wiou
            ],
            out_specs=(pl.BlockSpec((seq_pad, H), const2),
                       pl.BlockSpec((seq_pad, H), const2)),
            scratch_shapes=[
                pltpu.VMEM((seq_pad, 4 * H), jnp.float32),   # x4
                pltpu.VMEM((seq_pad, H), jnp.float32),       # wm
                pltpu.VMEM((seq_pad, H), jnp.float32),       # C state
                pltpu.VMEM((seq_pad, H), jnp.float32),       # H state
            ]),
        compiler_params=pltpu.CompilerParams(
            dimension_semantics=("arbitrary",)),             # levels are sequential
    )(jnp.asarray(xsel), jnp.asarray(xscat), jnp.asarray(csel),
      inputs_p, edges_p,
      packed["wx4"], packed["b4"], packed["wmx"],
      packed["whf"], packed["wh"], packed["wiou"])

    return out_c[:seq], out_h[:seq]


# ----------------------------------------------------------------------------
# Pure-JAX reference (per-node, recursive) for correctness checking
# ----------------------------------------------------------------------------
def node_forward_ref(params, x, child_c, child_h, child_w):
    m = (child_w @ params["wmx"]) * (child_h @ params["wmh"])
    h_sum = jnp.sum(m @ params["wh"], axis=0, keepdims=True)
    i = jax.nn.sigmoid(x @ params["wxi"] + h_sum @ params["whi"] + params["bi"])
    o = jax.nn.sigmoid(x @ params["wxo"] + h_sum @ params["who"] + params["bo"])
    u = jnp.tanh(x @ params["wxu"] + h_sum @ params["whu"] + params["bu"])
    f = jax.nn.sigmoid(child_h @ params["fhw"] + params["fhb"]
                       + x @ params["fxw"] + params["fxb"])
    c = i * u + jnp.sum(f * child_c, axis=0, keepdims=True)
    h = o * jnp.tanh(c)
    return c, h


def tree_forward_ref(params, tree, inputs, edge_inputs, hidden_size, edge_size):
    for child in tree.children:
        tree_forward_ref(params, child, inputs, edge_inputs, hidden_size, edge_size)
    if tree.num_children == 0:
        child_c = jnp.zeros((1, hidden_size), jnp.float32)
        child_h = jnp.zeros((1, hidden_size), jnp.float32)
        child_w = jnp.zeros((1, edge_size), jnp.float32)
    else:
        child_c = jnp.concatenate([c.state[0] for c in tree.children], axis=0)
        child_h = jnp.concatenate([c.state[1] for c in tree.children], axis=0)
        child_w = jnp.stack([edge_inputs[c.idx] for c in tree.children], axis=0)
    x = inputs[tree.idx][None, :]
    tree.state = node_forward_ref(params, x, child_c, child_h, child_w)
    return tree.state


# ----------------------------------------------------------------------------
# Parameters (PyTorch weight is (out,in); we store the transpose (in,out)).
# ----------------------------------------------------------------------------
def init_params(key, input_size, hidden_size, edge_size):
    ks = jax.random.split(key, 12)
    s = 0.1
    H = hidden_size

    def w(k, shape):
        return s * jax.random.normal(k, shape, jnp.float32)

    ioux_w = w(ks[0], (input_size, 3 * H))
    iouh_w = w(ks[1], (H, 3 * H))
    ioux_b = w(ks[2], (1, 3 * H))
    iouh_b = w(ks[3], (1, 3 * H))
    b = ioux_b + iouh_b                          # biases always appear summed

    return dict(
        wmx=w(ks[4], (edge_size, H)),
        wmh=w(ks[5], (H, H)),
        wh=w(ks[6], (H, H)),
        wxi=ioux_w[:, 0:H], wxo=ioux_w[:, H:2 * H], wxu=ioux_w[:, 2 * H:3 * H],
        whi=iouh_w[:, 0:H], who=iouh_w[:, H:2 * H], whu=iouh_w[:, 2 * H:3 * H],
        bi=b[:, 0:H], bo=b[:, H:2 * H], bu=b[:, 2 * H:3 * H],
        fxw=w(ks[7], (input_size, H)),
        fxb=w(ks[8], (1, H)),
        fhw=w(ks[9], (H, H)),
        fhb=w(ks[10], (1, H)),
    )


def pack_params(p):
    """Pack weights into the lane-dense layouts the kernel consumes."""
    return dict(
        wx4=jnp.concatenate([p["wxi"], p["wxo"], p["wxu"], p["fxw"]], axis=1),       # (In,4H)
        b4=jnp.concatenate([p["bi"], p["bo"], p["bu"], p["fxb"] + p["fhb"]], axis=1),  # (1,4H)
        wmx=p["wmx"],                                                                 # (E,H)
        whf=jnp.concatenate([p["wmh"], p["fhw"]], axis=1),                            # (H,2H)
        wh=p["wh"],                                                                   # (H,H)
        wiou=jnp.concatenate([p["whi"], p["who"], p["whu"]], axis=1),                 # (H,3H)
    )


if __name__ == "__main__":
    input_size, hidden_size, edge_size, seq = 32, 32, 16, 8

    key = jax.random.PRNGKey(0)
    kp, kx, ke = jax.random.split(key, 3)
    params = init_params(kp, input_size, hidden_size, edge_size)
    packed = pack_params(params)
    inputs = jax.random.normal(kx, (seq, input_size), jnp.float32)
    edge_inputs = jax.random.normal(ke, (seq, edge_size), jnp.float32)

    # Small dependency tree over the 8 tokens:
    #   0 -> {1, 2, 3}; 1 -> {4, 5}; 2 -> {6}; 3 -> {7}; 4..7 leaves.
    def build_tree():
        n4, n5, n6, n7 = Tree(4), Tree(5), Tree(6), Tree(7)
        n1 = Tree(1, [n4, n5])
        n2 = Tree(2, [n6])
        n3 = Tree(3, [n7])
        return Tree(0, [n1, n2, n3])

    # Pallas forward: whole tree in one kernel (grid over levels).
    root = build_tree()
    C, Hs = mtreelstm_forward_pallas(packed, root, inputs, edge_inputs, hidden_size)
    C = jax.block_until_ready(C)
    Hs = jax.block_until_ready(Hs)

    # Pure-JAX recursive reference over the same tree.
    root_ref = build_tree()
    tree_forward_ref(params, root_ref, inputs, edge_inputs, hidden_size, edge_size)
    C_ref = np.zeros((seq, hidden_size), np.float32)
    H_ref = np.zeros((seq, hidden_size), np.float32)

    def collect(node):
        C_ref[node.idx] = np.asarray(node.state[0][0])
        H_ref[node.idx] = np.asarray(node.state[1][0])
        for ch in node.children:
            collect(ch)

    collect(root_ref)

    assert C.shape == (seq, hidden_size) and Hs.shape == (seq, hidden_size)
    assert jnp.allclose(C, jnp.asarray(C_ref), atol=1e-4, rtol=1e-4)
    assert jnp.allclose(Hs, jnp.asarray(H_ref), atol=1e-4, rtol=1e-4)
    # Root state (what mTreeLSTM.forward returns) is C[0], Hs[0].
    assert jnp.allclose(C[0:1], root_ref.state[0], atol=1e-4, rtol=1e-4)
    assert jnp.allclose(Hs[0:1], root_ref.state[1], atol=1e-4, rtol=1e-4)

    print("KERNEL_OK")
</pallas_src>

<mosaic_0001>
module attributes {stable_mosaic.version = 11 : i64} {
  func.func @_mtreelstm_kernel(%arg0: i32, %arg1: memref<1x8x8xf32, #tpu.memory_space<vmem>>, %arg2: memref<1x8x8xf32, #tpu.memory_space<vmem>>, %arg3: memref<1x24x8xf32, #tpu.memory_space<vmem>>, %arg4: memref<8x32xf32, #tpu.memory_space<vmem>>, %arg5: memref<8x16xf32, #tpu.memory_space<vmem>>, %arg6: memref<32x128xf32, #tpu.memory_space<vmem>>, %arg7: memref<1x128xf32, #tpu.memory_space<vmem>>, %arg8: memref<16x32xf32, #tpu.memory_space<vmem>>, %arg9: memref<32x64xf32, #tpu.memory_space<vmem>>, %arg10: memref<32x32xf32, #tpu.memory_space<vmem>>, %arg11: memref<32x96xf32, #tpu.memory_space<vmem>>, %arg12: memref<8x32xf32, #tpu.memory_space<vmem>>, %arg13: memref<8x32xf32, #tpu.memory_space<vmem>>, %arg14: memref<8x128xf32, #tpu.memory_space<vmem>>, %arg15: memref<8x32xf32, #tpu.memory_space<vmem>>, %arg16: memref<8x32xf32, #tpu.memory_space<vmem>>, %arg17: memref<8x32xf32, #tpu.memory_space<vmem>>) attributes {dimension_semantics = [#tpu.dimension_semantics<arbitrary>], iteration_bounds = array<i64: 3>, scalar_prefetch = 0 : i64, scratch_operands = 4 : i64, tpu.core_type = #tpu.core_type<tc>, window_params = [{transform_indices = @transform_0, window_bounds = array<i64: 1, 8, 8>}, {transform_indices = @transform_1, window_bounds = array<i64: 1, 8, 8>}, {transform_indices = @transform_2, window_bounds = array<i64: 1, 24, 8>}, {pipeline_mode = #tpu.pipeline_mode<synchronous>, transform_indices = @transform_3, window_bounds = array<i64: 8, 32>}, {pipeline_mode = #tpu.pipeline_mode<synchronous>, transform_indices = @transform_4, window_bounds = array<i64: 8, 16>}, {pipeline_mode = #tpu.pipeline_mode<synchronous>, transform_indices = @transform_5, window_bounds = array<i64: 32, 128>}, {pipeline_mode = #tpu.pipeline_mode<synchronous>, transform_indices = @transform_6, window_bounds = array<i64: 1, 128>}, {pipeline_mode = #tpu.pipeline_mode<synchronous>, transform_indices = @transform_7, window_bounds = array<i64: 16, 32>}, {pipeline_mode = #tpu.pipeline_mode<synchronous>, transform_indices = @transform_8, window_bounds = array<i64: 32, 64>}, {pipeline_mode = #tpu.pipeline_mode<synchronous>, transform_indices = @transform_9, window_bounds = array<i64: 32, 32>}, {pipeline_mode = #tpu.pipeline_mode<synchronous>, transform_indices = @transform_10, window_bounds = array<i64: 32, 96>}, {pipeline_mode = #tpu.pipeline_mode<synchronous>, transform_indices = @transform_11, window_bounds = array<i64: 8, 32>}, {pipeline_mode = #tpu.pipeline_mode<synchronous>, transform_indices = @transform_12, window_bounds = array<i64: 8, 32>}]} {
    %c0_i32 = arith.constant 0 : i32
    %0 = arith.cmpi eq, %arg0, %c0_i32 : i32
    %1 = arith.extui %0 : i1 to i32
    %c0_i32_0 = arith.constant 0 : i32
    %2 = arith.cmpi ne, %1, %c0_i32_0 : i32
    scf.if %2 {
      %c0_53 = arith.constant 0 : index
      %c0_54 = arith.constant 0 : index
      %96 = vector.load %arg4[%c0_53, %c0_54] : memref<8x32xf32, #tpu.memory_space<vmem>>, vector<8x32xf32>
      %c0_55 = arith.constant 0 : index
      %c0_56 = arith.constant 0 : index
      %97 = vector.load %arg6[%c0_55, %c0_56] : memref<32x128xf32, #tpu.memory_space<vmem>>, vector<32x128xf32>
      %cst_57 = arith.constant dense<0.000000e+00> : vector<8x128xf32>
      %98 = tpu.matmul %96, %97, %cst_57 {dimension_numbers = #tpu.dot_dimension_numbers<[1], [0], [0], [1], [0, 0, 1, 1], [], []>} : vector<8x32xf32>, vector<32x128xf32>, vector<8x128xf32> -> vector<8x128xf32>
      %c0_58 = arith.constant 0 : index
      %c0_59 = arith.constant 0 : index
      %99 = vector.load %arg7[%c0_58, %c0_59] : memref<1x128xf32, #tpu.memory_space<vmem>>, vector<1x128xf32>
      %100 = vector.broadcast %99 : vector<1x128xf32> to vector<8x128xf32>
      %101 = arith.addf %98, %100 : vector<8x128xf32>
      %c0_60 = arith.constant 0 : index
      %c0_61 = arith.constant 0 : index
      %102 = vector.load %arg14[%c0_60, %c0_61] : memref<8x128xf32, #tpu.memory_space<vmem>>, vector<8x128xf32>
      tpu.vector_store %arg14[%c0_60, %c0_61], %101 {strides = array<i32>} : memref<8x128xf32, #tpu.memory_space<vmem>>, vector<8x128xf32>,
      %c0_62 = arith.constant 0 : index
      %c0_63 = arith.constant 0 : index
      %103 = vector.load %arg5[%c0_62, %c0_63] : memref<8x16xf32, #tpu.memory_space<vmem>>, vector<8x16xf32>
      %c0_64 = arith.constant 0 : index
      %c0_65 = arith.constant 0 : index
      %104 = vector.load %arg8[%c0_64, %c0_65] : memref<16x32xf32, #tpu.memory_space<vmem>>, vector<16x32xf32>
      %cst_66 = arith.constant dense<0.000000e+00> : vector<8x32xf32>
      %105 = tpu.matmul %103, %104, %cst_66 {dimension_numbers = #tpu.dot_dimension_numbers<[1], [0], [0], [1], [0, 0, 1, 1], [], []>} : vector<8x16xf32>, vector<16x32xf32>, vector<8x32xf32> -> vector<8x32xf32>
      %c0_67 = arith.constant 0 : index
      %c0_68 = arith.constant 0 : index
      %106 = vector.load %arg15[%c0_67, %c0_68] : memref<8x32xf32, #tpu.memory_space<vmem>>, vector<8x32xf32>
      tpu.vector_store %arg15[%c0_67, %c0_68], %105 {strides = array<i32>} : memref<8x32xf32, #tpu.memory_space<vmem>>, vector<8x32xf32>,
      %cst_69 = arith.constant 0.000000e+00 : f32
      %107 = vector.broadcast %cst_69 : f32 to vector<8x32xf32>
      %c0_70 = arith.constant 0 : index
      %c0_71 = arith.constant 0 : index
      %108 = vector.load %arg16[%c0_70, %c0_71] : memref<8x32xf32, #tpu.memory_space<vmem>>, vector<8x32xf32>
      tpu.vector_store %arg16[%c0_70, %c0_71], %107 {strides = array<i32>} : memref<8x32xf32, #tpu.memory_space<vmem>>, vector<8x32xf32>,
      %cst_72 = arith.constant 0.000000e+00 : f32
      %109 = vector.broadcast %cst_72 : f32 to vector<8x32xf32>
      %c0_73 = arith.constant 0 : index
      %c0_74 = arith.constant 0 : index
      %110 = vector.load %arg17[%c0_73, %c0_74] : memref<8x32xf32, #tpu.memory_space<vmem>>, vector<8x32xf32>
      tpu.vector_store %arg17[%c0_73, %c0_74], %109 {strides = array<i32>} : memref<8x32xf32, #tpu.memory_space<vmem>>, vector<8x32xf32>,
    } else {
    }
    %c0 = arith.constant 0 : index
    %c0_1 = arith.constant 0 : index
    %c0_2 = arith.constant 0 : index
    %3 = vector.load %arg1[%c0, %c0_1, %c0_2] : memref<1x8x8xf32, #tpu.memory_space<vmem>>, vector<1x8x8xf32>
    %4 = vector.shape_cast %3 : vector<1x8x8xf32> to vector<8x8xf32>
    %c0_3 = arith.constant 0 : index
    %c0_4 = arith.constant 0 : index
    %c0_5 = arith.constant 0 : index
    %5 = vector.load %arg3[%c0_3, %c0_4, %c0_5] : memref<1x24x8xf32, #tpu.memory_space<vmem>>, vector<1x24x8xf32>
    %6 = vector.shape_cast %5 : vector<1x24x8xf32> to vector<24x8xf32>
    %c0_6 = arith.constant 0 : index
    %c0_7 = arith.constant 0 : index
    %7 = vector.load %arg14[%c0_6, %c0_7] : memref<8x128xf32, #tpu.memory_space<vmem>>, vector<8x128xf32>
    %cst = arith.constant dense<0.000000e+00> : vector<8x128xf32>
    %8 = tpu.matmul %4, %7, %cst {dimension_numbers = #tpu.dot_dimension_numbers<[1], [0], [0], [1], [0, 0, 1, 1], [], []>} : vector<8x8xf32>, vector<8x128xf32>, vector<8x128xf32> -> vector<8x128xf32>
    %c0_8 = arith.constant 0 : index
    %c0_9 = arith.constant 0 : index
    %9 = vector.load %arg16[%c0_8, %c0_9] : memref<8x32xf32, #tpu.memory_space<vmem>>, vector<8x32xf32>
    %cst_10 = arith.constant dense<0.000000e+00> : vector<24x32xf32>
    %10 = tpu.matmul %6, %9, %cst_10 {dimension_numbers = #tpu.dot_dimension_numbers<[1], [0], [0], [1], [0, 0, 1, 1], [], []>} : vector<24x8xf32>, vector<8x32xf32>, vector<24x32xf32> -> vector<24x32xf32>
    %c0_11 = arith.constant 0 : index
    %c0_12 = arith.constant 0 : index
    %11 = vector.load %arg17[%c0_11, %c0_12] : memref<8x32xf32, #tpu.memory_space<vmem>>, vector<8x32xf32>
    %cst_13 = arith.constant dense<0.000000e+00> : vector<24x32xf32>
    %12 = tpu.matmul %6, %11, %cst_13 {dimension_numbers = #tpu.dot_dimension_numbers<[1], [0], [0], [1], [0, 0, 1, 1], [], []>} : vector<24x8xf32>, vector<8x32xf32>, vector<24x32xf32> -> vector<24x32xf32>
    %c0_14 = arith.constant 0 : index
    %c0_15 = arith.constant 0 : index
    %13 = vector.load %arg15[%c0_14, %c0_15] : memref<8x32xf32, #tpu.memory_space<vmem>>, vector<8x32xf32>
    %cst_16 = arith.constant dense<0.000000e+00> : vector<24x32xf32>
    %14 = tpu.matmul %6, %13, %cst_16 {dimension_numbers = #tpu.dot_dimension_numbers<[1], [0], [0], [1], [0, 0, 1, 1], [], []>} : vector<24x8xf32>, vector<8x32xf32>, vector<24x32xf32> -> vector<24x32xf32>
    %c0_17 = arith.constant 0 : index
    %c0_18 = arith.constant 0 : index
    %15 = vector.load %arg9[%c0_17, %c0_18] : memref<32x64xf32, #tpu.memory_space<vmem>>, vector<32x64xf32>
    %cst_19 = arith.constant dense<0.000000e+00> : vector<24x64xf32>
    %16 = tpu.matmul %12, %15, %cst_19 {dimension_numbers = #tpu.dot_dimension_numbers<[1], [0], [0], [1], [0, 0, 1, 1], [], []>} : vector<24x32xf32>, vector<32x64xf32>, vector<24x64xf32> -> vector<24x64xf32>
    %17 = vector.extract_strided_slice %16 {offsets = [0, 0], sizes = [24, 32], strides = [1, 1]} : vector<24x64xf32> to vector<24x32xf32>
    %18 = vector.extract_strided_slice %16 {offsets = [0, 32], sizes = [24, 32], strides = [1, 1]} : vector<24x64xf32> to vector<24x32xf32>
    %19 = arith.mulf %14, %17 : vector<24x32xf32>
    %c0_20 = arith.constant 0 : index
    %c0_21 = arith.constant 0 : index
    %20 = vector.load %arg10[%c0_20, %c0_21] : memref<32x32xf32, #tpu.memory_space<vmem>>, vector<32x32xf32>
    %cst_22 = arith.constant dense<0.000000e+00> : vector<24x32xf32>
    %21 = tpu.matmul %19, %20, %cst_22 {dimension_numbers = #tpu.dot_dimension_numbers<[1], [0], [0], [1], [0, 0, 1, 1], [], []>} : vector<24x32xf32>, vector<32x32xf32>, vector<24x32xf32> -> vector<24x32xf32>
    %22 = tpu.iota {dimensions = array<i32: 0>} : vector<8x24xi32>
    %23 = tpu.iota {dimensions = array<i32: 1>} : vector<8x24xi32>
    %c3_i32 = arith.constant 3 : i32
    %24 = vector.broadcast %c3_i32 : i32 to vector<8x24xi32>
    %25 = arith.muli %22, %24 : vector<8x24xi32>
    %26 = arith.cmpi sge, %23, %25 : vector<8x24xi32>
    %c1_i32 = arith.constant 1 : i32
    %27 = vector.broadcast %c1_i32 : i32 to vector<8x24xi32>
    %28 = arith.addi %22, %27 : vector<8x24xi32>
    %c3_i32_23 = arith.constant 3 : i32
    %29 = vector.broadcast %c3_i32_23 : i32 to vector<8x24xi32>
    %30 = arith.muli %28, %29 : vector<8x24xi32>
    %31 = arith.cmpi slt, %23, %30 : vector<8x24xi32>
    %32 = arith.andi %26, %31 : vector<8x24xi1>
    %33 = arith.extui %32 : vector<8x24xi1> to vector<8x24xi32>
    %34 = arith.sitofp %33 : vector<8x24xi32> to vector<8x24xf32>
    %35 = tpu.iota {dimensions = array<i32: 0>} : vector<24x8xi32>
    %36 = tpu.iota {dimensions = array<i32: 1>} : vector<24x8xi32>
    %c3_i32_24 = arith.constant 3 : i32
    %37 = vector.broadcast %c3_i32_24 : i32 to vector<24x8xi32>
    %38 = arith.muli %36, %37 : vector<24x8xi32>
    %39 = arith.cmpi sge, %35, %38 : vector<24x8xi32>
    %c1_i32_25 = arith.constant 1 : i32
    %40 = vector.broadcast %c1_i32_25 : i32 to vector<24x8xi32>
    %41 = arith.addi %36, %40 : vector<24x8xi32>
    %c3_i32_26 = arith.constant 3 : i32
    %42 = vector.broadcast %c3_i32_26 : i32 to vector<24x8xi32>
    %43 = arith.muli %41, %42 : vector<24x8xi32>
    %44 = arith.cmpi slt, %35, %43 : vector<24x8xi32>
    %45 = arith.andi %39, %44 : vector<24x8xi1>
    %46 = arith.extui %45 : vector<24x8xi1> to vector<24x8xi32>
    %47 = arith.sitofp %46 : vector<24x8xi32> to vector<24x8xf32>
    %cst_27 = arith.constant dense<0.000000e+00> : vector<8x32xf32>
    %48 = tpu.matmul %34, %21, %cst_27 {dimension_numbers = #tpu.dot_dimension_numbers<[1], [0], [0], [1], [0, 0, 1, 1], [], []>} : vector<8x24xf32>, vector<24x32xf32>, vector<8x32xf32> -> vector<8x32xf32>
    %c0_28 = arith.constant 0 : index
    %c0_29 = arith.constant 0 : index
    %49 = vector.load %arg11[%c0_28, %c0_29] : memref<32x96xf32, #tpu.memory_space<vmem>>, vector<32x96xf32>
    %cst_30 = arith.constant dense<0.000000e+00> : vector<8x96xf32>
    %50 = tpu.matmul %48, %49, %cst_30 {dimension_numbers = #tpu.dot_dimension_numbers<[1], [0], [0], [1], [0, 0, 1, 1], [], []>} : vector<8x32xf32>, vector<32x96xf32>, vector<8x96xf32> -> vector<8x96xf32>
    %51 = vector.extract_strided_slice %8 {offsets = [0, 0], sizes = [8, 96], strides = [1, 1]} : vector<8x128xf32> to vector<8x96xf32>
    %52 = arith.addf %50, %51 : vector<8x96xf32>
    %53 = vector.extract_strided_slice %52 {offsets = [0, 0], sizes = [8, 32], strides = [1, 1]} : vector<8x96xf32> to vector<8x32xf32>
    %54 = arith.negf %53 : vector<8x32xf32>
    %55 = math.exp %54 : vector<8x32xf32>
    %cst_31 = arith.constant 1.000000e+00 : f32
    %56 = vector.broadcast %cst_31 : f32 to vector<8x32xf32>
    %57 = arith.addf %56, %55 : vector<8x32xf32>
    %58 = arith.divf %56, %57 : vector<8x32xf32>
    %59 = vector.extract_strided_slice %52 {offsets = [0, 32], sizes = [8, 32], strides = [1, 1]} : vector<8x96xf32> to vector<8x32xf32>
    %60 = arith.negf %59 : vector<8x32xf32>
    %61 = math.exp %60 : vector<8x32xf32>
    %cst_32 = arith.constant 1.000000e+00 : f32
    %62 = vector.broadcast %cst_32 : f32 to vector<8x32xf32>
    %63 = arith.addf %62, %61 : vector<8x32xf32>
    %64 = arith.divf %62, %63 : vector<8x32xf32>
    %65 = vector.extract_strided_slice %52 {offsets = [0, 64], sizes = [8, 32], strides = [1, 1]} : vector<8x96xf32> to vector<8x32xf32>
    %66 = math.tanh %65 : vector<8x32xf32>
    %67 = vector.extract_strided_slice %8 {offsets = [0, 96], sizes = [8, 32], strides = [1, 1]} : vector<8x128xf32> to vector<8x32xf32>
    %cst_33 = arith.constant dense<0.000000e+00> : vector<24x32xf32>
    %68 = tpu.matmul %47, %67, %cst_33 {dimension_numbers = #tpu.dot_dimension_numbers<[1], [0], [0], [1], [0, 0, 1, 1], [], []>} : vector<24x8xf32>, vector<8x32xf32>, vector<24x32xf32> -> vector<24x32xf32>
    %69 = arith.addf %18, %68 : vector<24x32xf32>
    %70 = arith.negf %69 : vector<24x32xf32>
    %71 = math.exp %70 : vector<24x32xf32>
    %cst_34 = arith.constant 1.000000e+00 : f32
    %72 = vector.broadcast %cst_34 : f32 to vector<24x32xf32>
    %73 = arith.addf %72, %71 : vector<24x32xf32>
    %74 = arith.divf %72, %73 : vector<24x32xf32>
    %75 = arith.mulf %74, %10 : vector<24x32xf32>
    %cst_35 = arith.constant dense<0.000000e+00> : vector<8x32xf32>
    %76 = tpu.matmul %34, %75, %cst_35 {dimension_numbers = #tpu.dot_dimension_numbers<[1], [0], [0], [1], [0, 0, 1, 1], [], []>} : vector<8x24xf32>, vector<24x32xf32>, vector<8x32xf32> -> vector<8x32xf32>
    %77 = arith.mulf %58, %66 : vector<8x32xf32>
    %78 = arith.addf %77, %76 : vector<8x32xf32>
    %79 = math.tanh %78 : vector<8x32xf32>
    %80 = arith.mulf %64, %79 : vector<8x32xf32>
    %c0_36 = arith.constant 0 : index
    %c0_37 = arith.constant 0 : index
    %81 = vector.load %arg16[%c0_36, %c0_37] : memref<8x32xf32, #tpu.memory_space<vmem>>, vector<8x32xf32>
    %c0_38 = arith.constant 0 : index
    %c0_39 = arith.constant 0 : index
    %c0_40 = arith.constant 0 : index
    %82 = vector.load %arg2[%c0_38, %c0_39, %c0_40] : memref<1x8x8xf32, #tpu.memory_space<vmem>>, vector<1x8x8xf32>
    %83 = vector.shape_cast %82 : vector<1x8x8xf32> to vector<8x8xf32>
    %cst_41 = arith.constant dense<0.000000e+00> : vector<8x32xf32>
    %84 = tpu.matmul %83, %78, %cst_41 {dimension_numbers = #tpu.dot_dimension_numbers<[1], [0], [0], [1], [0, 0, 1, 1], [], []>} : vector<8x8xf32>, vector<8x32xf32>, vector<8x32xf32> -> vector<8x32xf32>
    %85 = arith.addf %81, %84 : vector<8x32xf32>
    %c0_42 = arith.constant 0 : index
    %c0_43 = arith.constant 0 : index
    %86 = vector.load %arg16[%c0_42, %c0_43] : memref<8x32xf32, #tpu.memory_space<vmem>>, vector<8x32xf32>
    tpu.vector_store %arg16[%c0_42, %c0_43], %85 {strides = array<i32>} : memref<8x32xf32, #tpu.memory_space<vmem>>, vector<8x32xf32>,
    %c0_44 = arith.constant 0 : index
    %c0_45 = arith.constant 0 : index
    %87 = vector.load %arg17[%c0_44, %c0_45] : memref<8x32xf32, #tpu.memory_space<vmem>>, vector<8x32xf32>
    %c0_46 = arith.constant 0 : index
    %c0_47 = arith.constant 0 : index
    %c0_48 = arith.constant 0 : index
    %88 = vector.load %arg2[%c0_46, %c0_47, %c0_48] : memref<1x8x8xf32, #tpu.memory_space<vmem>>, vector<1x8x8xf32>
    %89 = vector.shape_cast %88 : vector<1x8x8xf32> to vector<8x8xf32>
    %cst_49 = arith.constant dense<0.000000e+00> : vector<8x32xf32>
    %90 = tpu.matmul %89, %80, %cst_49 {dimension_numbers = #tpu.dot_dimension_numbers<[1], [0], [0], [1], [0, 0, 1, 1], [], []>} : vector<8x8xf32>, vector<8x32xf32>, vector<8x32xf32> -> vector<8x32xf32>
    %91 = arith.addf %87, %90 : vector<8x32xf32>
    %c0_50 = arith.constant 0 : index
    %c0_51 = arith.constant 0 : index
    %92 = vector.load %arg17[%c0_50, %c0_51] : memref<8x32xf32, #tpu.memory_space<vmem>>, vector<8x32xf32>
    tpu.vector_store %arg17[%c0_50, %c0_51], %91 {strides = array<i32>} : memref<8x32xf32, #tpu.memory_space<vmem>>, vector<8x32xf32>,
    %c2_i32 = arith.constant 2 : i32
    %93 = arith.cmpi eq, %arg0, %c2_i32 : i32
    %94 = arith.extui %93 : i1 to i32
    %c0_i32_52 = arith.constant 0 : i32
    %95 = arith.cmpi ne, %94, %c0_i32_52 : i32
    scf.if %95 {
      %c0_53 = arith.constant 0 : index
      %c0_54 = arith.constant 0 : index
      %96 = vector.load %arg16[%c0_53, %c0_54] : memref<8x32xf32, #tpu.memory_space<vmem>>, vector<8x32xf32>
      %c0_55 = arith.constant 0 : index
      %c0_56 = arith.constant 0 : index
      %97 = vector.load %arg12[%c0_55, %c0_56] : memref<8x32xf32, #tpu.memory_space<vmem>>, vector<8x32xf32>
      tpu.vector_store %arg12[%c0_55, %c0_56], %96 {strides = array<i32>} : memref<8x32xf32, #tpu.memory_space<vmem>>, vector<8x32xf32>,
      %c0_57 = arith.constant 0 : index
      %c0_58 = arith.constant 0 : index
      %98 = vector.load %arg17[%c0_57, %c0_58] : memref<8x32xf32, #tpu.memory_space<vmem>>, vector<8x32xf32>
      %c0_59 = arith.constant 0 : index
      %c0_60 = arith.constant 0 : index
      %99 = vector.load %arg13[%c0_59, %c0_60] : memref<8x32xf32, #tpu.memory_space<vmem>>, vector<8x32xf32>
      tpu.vector_store %arg13[%c0_59, %c0_60], %98 {strides = array<i32>} : memref<8x32xf32, #tpu.memory_space<vmem>>, vector<8x32xf32>,
    } else {
    }
    return
  }
  func.func @transform_0(%arg0: i32) -> (i32, i32, i32) {
    %c0_i32 = arith.constant 0 : i32
    %c0_i32_0 = arith.constant 0 : i32
    %c0_i32_1 = arith.constant 0 : i32
    return %arg0, %c0_i32, %c0_i32_0 : i32, i32, i32
  }
  func.func @transform_1(%arg0: i32) -> (i32, i32, i32) {
    %c0_i32 = arith.constant 0 : i32
    %c0_i32_0 = arith.constant 0 : i32
    %c0_i32_1 = arith.constant 0 : i32
    return %arg0, %c0_i32, %c0_i32_0 : i32, i32, i32
  }
  func.func @transform_2(%arg0: i32) -> (i32, i32, i32) {
    %c0_i32 = arith.constant 0 : i32
    %c0_i32_0 = arith.constant 0 : i32
    %c0_i32_1 = arith.constant 0 : i32
    return %arg0, %c0_i32, %c0_i32_0 : i32, i32, i32
  }
  func.func @transform_3(%arg0: i32) -> (i32, i32) {
    %c0_i32 = arith.constant 0 : i32
    %c0_i32_0 = arith.constant 0 : i32
    %c0_i32_1 = arith.constant 0 : i32
    return %c0_i32, %c0_i32_0 : i32, i32
  }
  func.func @transform_4(%arg0: i32) -> (i32, i32) {
    %c0_i32 = arith.constant 0 : i32
    %c0_i32_0 = arith.constant 0 : i32
    %c0_i32_1 = arith.constant 0 : i32
    return %c0_i32, %c0_i32_0 : i32, i32
  }
  func.func @transform_5(%arg0: i32) -> (i32, i32) {
    %c0_i32 = arith.constant 0 : i32
    %c0_i32_0 = arith.constant 0 : i32
    %c0_i32_1 = arith.constant 0 : i32
    return %c0_i32, %c0_i32_0 : i32, i32
  }
  func.func @transform_6(%arg0: i32) -> (i32, i32) {
    %c0_i32 = arith.constant 0 : i32
    %c0_i32_0 = arith.constant 0 : i32
    %c0_i32_1 = arith.constant 0 : i32
    return %c0_i32, %c0_i32_0 : i32, i32
  }
  func.func @transform_7(%arg0: i32) -> (i32, i32) {
    %c0_i32 = arith.constant 0 : i32
    %c0_i32_0 = arith.constant 0 : i32
    %c0_i32_1 = arith.constant 0 : i32
    return %c0_i32, %c0_i32_0 : i32, i32
  }
  func.func @transform_8(%arg0: i32) -> (i32, i32) {
    %c0_i32 = arith.constant 0 : i32
    %c0_i32_0 = arith.constant 0 : i32
    %c0_i32_1 = arith.constant 0 : i32
    return %c0_i32, %c0_i32_0 : i32, i32
  }
  func.func @transform_9(%arg0: i32) -> (i32, i32) {
    %c0_i32 = arith.constant 0 : i32
    %c0_i32_0 = arith.constant 0 : i32
    %c0_i32_1 = arith.constant 0 : i32
    return %c0_i32, %c0_i32_0 : i32, i32
  }
  func.func @transform_10(%arg0: i32) -> (i32, i32) {
    %c0_i32 = arith.constant 0 : i32
    %c0_i32_0 = arith.constant 0 : i32
    %c0_i32_1 = arith.constant 0 : i32
    return %c0_i32, %c0_i32_0 : i32, i32
  }
  func.func @transform_11(%arg0: i32) -> (i32, i32) {
    %c0_i32 = arith.constant 0 : i32
    %c0_i32_0 = arith.constant 0 : i32
    %c0_i32_1 = arith.constant 0 : i32
    return %c0_i32, %c0_i32_0 : i32, i32
  }
  func.func @transform_12(%arg0: i32) -> (i32, i32) {
    %c0_i32 = arith.constant 0 : i32
    %c0_i32_0 = arith.constant 0 : i32
    %c0_i32_1 = arith.constant 0 : i32
    return %c0_i32, %c0_i32_0 : i32, i32
  }
}

</mosaic_0001>

<llo_original>
// kernel: tpu_custom_call.1
$region0: #{tpu_custom_call.1}
  #allocation0 [shape = 'u32[]', space=smem, size = 0x4, offset = 0x4, fixed_abs, tag = 'smem constant byte address 0x4 - core index']
  #allocation1 [shape = 'u32[72,128]{1,0:T(1,128)}', space=vmem, size = 0x9000, scoped, tag = 'internal scratch']
  #allocation2 [shape = 'f32[8,128]{1,0:T(8,128)}', space=vmem, size = 0x1000, scoped, tag = 'scratch operand']
  #allocation3 [shape = 'f32[8,32]{1,0:T(8,128)}', space=vmem, size = 0x1000, scoped, tag = 'scratch operand']
  #allocation4 [shape = 'f32[8,32]{1,0:T(8,128)}', space=vmem, size = 0x1000, scoped, tag = 'scratch operand']
  #allocation5 [shape = 'f32[8,32]{1,0:T(8,128)}', space=vmem, size = 0x1000, scoped, tag = 'scratch operand']
  %s0 = inlined_call_operand.hbm [shape: f32[3,8,8], index: 0, kind: input, shape index: {}]
  %s1 = inlined_call_operand.hbm [shape: f32[3,8,8], index: 1, kind: input, shape index: {}]
  %s2 = inlined_call_operand.vmem [shape: f32[3,24,8], index: 2, kind: input, shape index: {}]
  %s3 = inlined_call_operand.hbm [shape: f32[8,32], index: 3, kind: input, shape index: {}]
  %s4 = inlined_call_operand.hbm [shape: f32[8,16], index: 4, kind: input, shape index: {}]
  %s5 = inlined_call_operand.vmem [shape: f32[32,128], index: 5, kind: input, shape index: {}]
  %s6 = inlined_call_operand.vmem [shape: f32[1,128], index: 6, kind: input, shape index: {}]
  %s7 = inlined_call_operand.hbm [shape: f32[16,32], index: 7, kind: input, shape index: {}]
  %s8 = inlined_call_operand.vmem [shape: f32[32,64], index: 8, kind: input, shape index: {}]
  %s9 = inlined_call_operand.vmem [shape: f32[32,32], index: 9, kind: input, shape index: {}]
  %s10 = inlined_call_operand.hbm [shape: f32[32,96], index: 10, kind: input, shape index: {}]
  %s11 = inlined_call_operand.hbm [shape: f32[8,32], index: 11, kind: output, shape index: {0}]
  %s12 = inlined_call_operand.hbm [shape: f32[8,32], index: 12, kind: output, shape index: {1}]
  %13 = xla_tuple %s11, %s12
  %s14 = sld [smem:[#allocation0]]
  $region117: #{tpu_custom_call.1} parent=0
    _
  %s16 = ssub.s32 1, %s14
  %s17 = scalar_select 0, %s16, %s14
  $region1: #{tpu_custom_call.1} parent=0
    #allocation6 [shape = 'u8[8192]{0}', space=vmem, size = 0x2000, scoped, tag = 'input window, operand 0']
    #allocation7 [shape = 's32[2]{0}', space=sflag, size = 0x8, scoped, tag = 'scoped memory for tpu_custom_call.1']
    #allocation8 [shape = 's32[2]{0}', space=sflag, size = 0x8, scoped, tag = 'scoped memory for tpu_custom_call.1']
    #allocation9 [shape = 'u8[8192]{0}', space=vmem, size = 0x2000, scoped, tag = 'input window, operand 1']
    #allocation10 [shape = 's32[2]{0}', space=sflag, size = 0x8, scoped, tag = 'scoped memory for tpu_custom_call.1']
    #allocation11 [shape = 'u8[4096]{0}', space=vmem, size = 0x1000, scoped, tag = 'input window, operand 3, single buffered']
    #allocation12 [shape = 'u8[4096]{0}', space=vmem, size = 0x1000, scoped, tag = 'input window, operand 4, single buffered']
    #allocation13 [shape = 's32[1]{0}', space=sflag, size = 0x4, scoped, tag = 'scoped memory for tpu_custom_call.1']
    #allocation14 [shape = 'u8[8192]{0}', space=vmem, size = 0x2000, scoped, tag = 'input window, operand 7, single buffered']
    #allocation15 [shape = 'u8[16384]{0}', space=vmem, size = 0x4000, scoped, tag = 'input window, operand 10, single buffered']
    #allocation16 [shape = 's32[1]{0}', space=sflag, size = 0x4, scoped, tag = 'scoped memory for tpu_custom_call.1']
    #allocation17 [shape = 'u8[4096]{0}', space=vmem, size = 0x1000, scoped, tag = 'output window, operand 0, single buffered']
    #allocation18 [shape = 'u8[4096]{0}', space=vmem, size = 0x1000, scoped, tag = 'output window, operand 1, single buffered']
    #allocation19 [shape = 's32[1]{0}', space=sflag, size = 0x4, scoped, tag = 'scoped memory for tpu_custom_call.1']
    %18 = vsyncpa [#allocation7], 0
    %s19 = scalar_lea.sflag [#allocation7], 1
    %20 = vsyncpa %s19, 0
    %21 = vsyncpa [#allocation10], 0
    %s22 = scalar_lea.sflag [#allocation10], 1
    %23 = vsyncpa %s22, 0
    %24 = vsyncpa [#allocation13], 0
    %25 = vsyncpa [#allocation16], 0
    %26 = vsyncpa [#allocation8], 0
    %27 = vsyncpa [#allocation19], 0
    loop: start=0, step=1, limit=5
    $region2: #{tpu_custom_call.1} parent=1 // loop_pre_header
      _
    $region3: #{tpu_custom_call.1} parent=1 // loop_header
      %s29 = sphi 0, %s33
      %p30 = scmp.ge.s32.totalorder %s29, 5
      %s39 = sphi 0, %s41
      %s42 = sphi 0, %s39
      %s43 = sphi 0, %s42
      %s59 = sphi 0, %s43
      %s65 = sphi 0, %s67
      %s68 = sphi 0, %s65
      %s69 = sphi 0, %s68
      %s85 = sphi 0, %s69
      %s91 = sphi 0, %s93
      %s94 = sphi 0, %s91
      %s95 = sphi 0, %s94
      %s111 = sphi 0, %s95
      %s115 = sphi 0, %s115
      %s117 = sphi 0, %s115
      %s118 = sphi 0, %s117
      %s132 = sphi 0, %s118
      %s136 = sphi 0, %s136
      %s138 = sphi 0, %s136
      %s139 = sphi 0, %s138
      %s153 = sphi 0, %s139
      %s157 = sphi 0, %s157
      %s159 = sphi 0, %s157
      %s160 = sphi 0, %s159
      %s174 = sphi 0, %s160
      %s178 = sphi 0, %s178
      %s180 = sphi 0, %s178
      %s181 = sphi 0, %s180
      %s195 = sphi 0, %s181
      %s199 = sphi 0, %s199
      %s201 = sphi 0, %s199
      %s202 = sphi 0, %s201
      %s216 = sphi 0, %s202
      %s220 = sphi 0, %s220
      %s222 = sphi 0, %s220
      %s223 = sphi 0, %s222
      %s237 = sphi 0, %s223
      %s241 = sphi 0, %s241
      %s243 = sphi 0, %s241
      %s244 = sphi 0, %s243
      %s258 = sphi 0, %s244
      %s262 = sphi 0, %s262
      %s264 = sphi 0, %s262
      %s265 = sphi 0, %s264
      %s279 = sphi 0, %s265
      %s283 = sphi 0, %s283
      %s285 = sphi 0, %s283
      %s286 = sphi 0, %s285
      %s300 = sphi 0, %s286
      %s304 = sphi 0, %s304
      %s306 = sphi 0, %s304
      %s307 = sphi 0, %s306
      %s321 = sphi 0, %s307
    $region4: #{tpu_custom_call.1} parent=1 // loop_header_branch
      %32 = sbr.rel (%p30) target = $region8
    $region5: #{tpu_custom_call.1} parent=1 // loop_body
      %s34 = ssub.s32 %s29, 1
      %s35 = ssub.s32 %s29, 2
      %s36 = sadd.s32 %s29, 1
      %s37 = ssub.s32 %s29, %s36
      %p38 = scmp.eq.s32.totalorder %s37, 0
      %s40 = sadd.s32 %s39, 1
      %s41 = scalar_select %p38, %s39, %s40
      %p44 = pneg %p38
      %p45 = scmp.eq.s32.totalorder %s29, 2
      %p46 = por %p44, %p45
      %p47 = scmp.ne.s32.totalorder %s39, %s42
      %p48 = scmp.eq.s32.totalorder %s29, 0
      %p49 = por %p47, %p48
      %p50 = scmp.ne.s32.totalorder %s39, %s42
      %p51 = scmp.eq.s32.totalorder %s34, 2
      %p52 = por %p50, %p51
      %p53 = scmp.ne.s32.totalorder %s42, %s43
      %p54 = scmp.eq.s32.totalorder %s34, 0
      %p55 = por %p53, %p54
      %p56 = scmp.ne.s32.totalorder %s42, %s43
      %p57 = scmp.eq.s32.totalorder %s35, 2
      %p58 = por %p56, %p57
      %p60 = scmp.ne.s32.totalorder %s43, %s59
      %p61 = scmp.eq.s32.totalorder %s35, 0
      %p62 = por %p60, %p61
      %s63 = ssub.s32 %s29, %s36
      %p64 = scmp.eq.s32.totalorder %s63, 0
      %s66 = sadd.s32 %s65, 1
      %s67 = scalar_select %p64, %s65, %s66
      %p70 = pneg %p64
      %p71 = scmp.eq.s32.totalorder %s29, 2
      %p72 = por %p70, %p71
      %p73 = scmp.ne.s32.totalorder %s65, %s68
      %p74 = scmp.eq.s32.totalorder %s29, 0
      %p75 = por %p73, %p74
      %p76 = scmp.ne.s32.totalorder %s65, %s68
      %p77 = scmp.eq.s32.totalorder %s34, 2
      %p78 = por %p76, %p77
      %p79 = scmp.ne.s32.totalorder %s68, %s69
      %p80 = scmp.eq.s32.totalorder %s34, 0
      %p81 = por %p79, %p80
      %p82 = scmp.ne.s32.totalorder %s68, %s69
      %p83 = scmp.eq.s32.totalorder %s35, 2
      %p84 = por %p82, %p83
      %p86 = scmp.ne.s32.totalorder %s69, %s85
      %p87 = scmp.eq.s32.totalorder %s35, 0
      %p88 = por %p86, %p87
      %s89 = ssub.s32 %s29, %s36
      %p90 = scmp.eq.s32.totalorder %s89, 0
      %s92 = sadd.s32 %s91, 1
      %s93 = scalar_select %p90, %s91, %s92
      %p96 = pneg %p90
      %p97 = scmp.eq.s32.totalorder %s29, 2
      %p98 = por %p96, %p97
      %p99 = scmp.ne.s32.totalorder %s91, %s94
      %p100 = scmp.eq.s32.totalorder %s29, 0
      %p101 = por %p99, %p100
      %p102 = scmp.ne.s32.totalorder %s91, %s94
      %p103 = scmp.eq.s32.totalorder %s34, 2
      %p104 = por %p102, %p103
      %p105 = scmp.ne.s32.totalorder %s94, %s95
      %p106 = scmp.eq.s32.totalorder %s34, 0
      %p107 = por %p105, %p106
      %p108 = scmp.ne.s32.totalorder %s94, %s95
      %p109 = scmp.eq.s32.totalorder %s35, 2
      %p110 = por %p108, %p109
      %p112 = scmp.ne.s32.totalorder %s95, %s111
      %p113 = scmp.eq.s32.totalorder %s35, 0
      %p114 = por %p112, %p113
      %s116 = sadd.s32 %s115, 1
      %p119 = scmp.eq.s32.totalorder %s29, 2
      %p120 = scmp.ne.s32.totalorder %s115, %s117
      %p121 = scmp.eq.s32.totalorder %s29, 0
      %p122 = por %p120, %p121
      %p123 = scmp.ne.s32.totalorder %s115, %s117
      %p124 = scmp.eq.s32.totalorder %s34, 2
      %p125 = por %p123, %p124
      %p126 = scmp.ne.s32.totalorder %s117, %s118
      %p127 = scmp.eq.s32.totalorder %s34, 0
      %p128 = por %p126, %p127
      %p129 = scmp.ne.s32.totalorder %s117, %s118
      %p130 = scmp.eq.s32.totalorder %s35, 2
      %p131 = por %p129, %p130
      %p133 = scmp.ne.s32.totalorder %s118, %s132
      %p134 = scmp.eq.s32.totalorder %s35, 0
      %p135 = por %p133, %p134
      %s137 = sadd.s32 %s136, 1
      %p140 = scmp.eq.s32.totalorder %s29, 2
      %p141 = scmp.ne.s32.totalorder %s136, %s138
      %p142 = scmp.eq.s32.totalorder %s29, 0
      %p143 = por %p141, %p142
      %p144 = scmp.ne.s32.totalorder %s136, %s138
      %p145 = scmp.eq.s32.totalorder %s34, 2
      %p146 = por %p144, %p145
      %p147 = scmp.ne.s32.totalorder %s138, %s139
      %p148 = scmp.eq.s32.totalorder %s34, 0
      %p149 = por %p147, %p148
      %p150 = scmp.ne.s32.totalorder %s138, %s139
      %p151 = scmp.eq.s32.totalorder %s35, 2
      %p152 = por %p150, %p151
      %p154 = scmp.ne.s32.totalorder %s139, %s153
      %p155 = scmp.eq.s32.totalorder %s35, 0
      %p156 = por %p154, %p155
      %s158 = sadd.s32 %s157, 1
      %p161 = scmp.eq.s32.totalorder %s29, 2
      %p162 = scmp.ne.s32.totalorder %s157, %s159
      %p163 = scmp.eq.s32.totalorder %s29, 0
      %p164 = por %p162, %p163
      %p165 = scmp.ne.s32.totalorder %s157, %s159
      %p166 = scmp.eq.s32.totalorder %s34, 2
      %p167 = por %p165, %p166
      %p168 = scmp.ne.s32.totalorder %s159, %s160
      %p169 = scmp.eq.s32.totalorder %s34, 0
      %p170 = por %p168, %p169
      %p171 = scmp.ne.s32.totalorder %s159, %s160
      %p172 = scmp.eq.s32.totalorder %s35, 2
      %p173 = por %p171, %p172
      %p175 = scmp.ne.s32.totalorder %s160, %s174
      %p176 = scmp.eq.s32.totalorder %s35, 0
      %p177 = por %p175, %p176
      %s179 = sadd.s32 %s178, 1
      %p182 = scmp.eq.s32.totalorder %s29, 2
      %p183 = scmp.ne.s32.totalorder %s178, %s180
      %p184 = scmp.eq.s32.totalorder %s29, 0
      %p185 = por %p183, %p184
      %p186 = scmp.ne.s32.totalorder %s178, %s180
      %p187 = scmp.eq.s32.totalorder %s34, 2
      %p188 = por %p186, %p187
      %p189 = scmp.ne.s32.totalorder %s180, %s181
      %p190 = scmp.eq.s32.totalorder %s34, 0
      %p191 = por %p189, %p190
      %p192 = scmp.ne.s32.totalorder %s180, %s181
      %p193 = scmp.eq.s32.totalorder %s35, 2
      %p194 = por %p192, %p193
      %p196 = scmp.ne.s32.totalorder %s181, %s195
      %p197 = scmp.eq.s32.totalorder %s35, 0
      %p198 = por %p196, %p197
      %s200 = sadd.s32 %s199, 1
      %p203 = scmp.eq.s32.totalorder %s29, 2
      %p204 = scmp.ne.s32.totalorder %s199, %s201
      %p205 = scmp.eq.s32.totalorder %s29, 0
      %p206 = por %p204, %p205
      %p207 = scmp.ne.s32.totalorder %s199, %s201
      %p208 = scmp.eq.s32.totalorder %s34, 2
      %p209 = por %p207, %p208
      %p210 = scmp.ne.s32.totalorder %s201, %s202
      %p211 = scmp.eq.s32.totalorder %s34, 0
      %p212 = por %p210, %p211
      %p213 = scmp.ne.s32.totalorder %s201, %s202
      %p214 = scmp.eq.s32.totalorder %s35, 2
      %p215 = por %p213, %p214
      %p217 = scmp.ne.s32.totalorder %s202, %s216
      %p218 = scmp.eq.s32.totalorder %s35, 0
      %p219 = por %p217, %p218
      %s221 = sadd.s32 %s220, 1
      %p224 = scmp.eq.s32.totalorder %s29, 2
      %p225 = scmp.ne.s32.totalorder %s220, %s222
      %p226 = scmp.eq.s32.totalorder %s29, 0
      %p227 = por %p225, %p226
      %p228 = scmp.ne.s32.totalorder %s220, %s222
      %p229 = scmp.eq.s32.totalorder %s34, 2
      %p230 = por %p228, %p229
      %p231 = scmp.ne.s32.totalorder %s222, %s223
      %p232 = scmp.eq.s32.totalorder %s34, 0
      %p233 = por %p231, %p232
      %p234 = scmp.ne.s32.totalorder %s222, %s223
      %p235 = scmp.eq.s32.totalorder %s35, 2
      %p236 = por %p234, %p235
      %p238 = scmp.ne.s32.totalorder %s223, %s237
      %p239 = scmp.eq.s32.totalorder %s35, 0
      %p240 = por %p238, %p239
      %s242 = sadd.s32 %s241, 1
      %p245 = scmp.eq.s32.totalorder %s29, 2
      %p246 = scmp.ne.s32.totalorder %s241, %s243
      %p247 = scmp.eq.s32.totalorder %s29, 0
      %p248 = por %p246, %p247
      %p249 = scmp.ne.s32.totalorder %s241, %s243
      %p250 = scmp.eq.s32.totalorder %s34, 2
      %p251 = por %p249, %p250
      %p252 = scmp.ne.s32.totalorder %s243, %s244
      %p253 = scmp.eq.s32.totalorder %s34, 0
      %p254 = por %p252, %p253
      %p255 = scmp.ne.s32.totalorder %s243, %s244
      %p256 = scmp.eq.s32.totalorder %s35, 2
      %p257 = por %p255, %p256
      %p259 = scmp.ne.s32.totalorder %s244, %s258
      %p260 = scmp.eq.s32.totalorder %s35, 0
      %p261 = por %p259, %p260
      %s263 = sadd.s32 %s262, 1
      %p266 = scmp.eq.s32.totalorder %s29, 2
      %p267 = scmp.ne.s32.totalorder %s262, %s264
      %p268 = scmp.eq.s32.totalorder %s29, 0
      %p269 = por %p267, %p268
      %p270 = scmp.ne.s32.totalorder %s262, %s264
      %p271 = scmp.eq.s32.totalorder %s34, 2
      %p272 = por %p270, %p271
      %p273 = scmp.ne.s32.totalorder %s264, %s265
      %p274 = scmp.eq.s32.totalorder %s34, 0
      %p275 = por %p273, %p274
      %p276 = scmp.ne.s32.totalorder %s264, %s265
      %p277 = scmp.eq.s32.totalorder %s35, 2
      %p278 = por %p276, %p277
      %p280 = scmp.ne.s32.totalorder %s265, %s279
      %p281 = scmp.eq.s32.totalorder %s35, 0
      %p282 = por %p280, %p281
      %s284 = sadd.s32 %s283, 1
      %p287 = scmp.eq.s32.totalorder %s29, 2
      %p288 = scmp.ne.s32.totalorder %s283, %s285
      %p289 = scmp.eq.s32.totalorder %s29, 0
      %p290 = por %p288, %p289
      %p291 = scmp.ne.s32.totalorder %s283, %s285
      %p292 = scmp.eq.s32.totalorder %s34, 2
      %p293 = por %p291, %p292
      %p294 = scmp.ne.s32.totalorder %s285, %s286
      %p295 = scmp.eq.s32.totalorder %s34, 0
      %p296 = por %p294, %p295
      %p297 = scmp.ne.s32.totalorder %s285, %s286
      %p298 = scmp.eq.s32.totalorder %s35, 2
      %p299 = por %p297, %p298
      %p301 = scmp.ne.s32.totalorder %s286, %s300
      %p302 = scmp.eq.s32.totalorder %s35, 0
      %p303 = por %p301, %p302
      %s305 = sadd.s32 %s304, 1
      %p308 = scmp.eq.s32.totalorder %s29, 2
      %p309 = scmp.ne.s32.totalorder %s304, %s306
      %p310 = scmp.eq.s32.totalorder %s29, 0
      %p311 = por %p309, %p310
      %p312 = scmp.ne.s32.totalorder %s304, %s306
      %p313 = scmp.eq.s32.totalorder %s34, 2
      %p314 = por %p312, %p313
      %p315 = scmp.ne.s32.totalorder %s306, %s307
      %p316 = scmp.eq.s32.totalorder %s34, 0
      %p317 = por %p315, %p316
      %p318 = scmp.ne.s32.totalorder %s306, %s307
      %p319 = scmp.eq.s32.totalorder %s35, 2
      %p320 = por %p318, %p319
      %p322 = scmp.ne.s32.totalorder %s307, %s321
      %p323 = scmp.eq.s32.totalorder %s35, 0
      %p324 = por %p322, %p323
      %p325 = scmp.le.s32.totalorder 1, %s29
      %p326 = scmp.lt.s32.totalorder %s29, 4
      %p327 = pnand %p325, %p326
      %p328 = pneg %p327
      // Predicated region
      $region9: #{tpu_custom_call.1} parent=5 // pred_check
        _
      $region10: #{tpu_custom_call.1} parent=5 // pred_check_branch
        %330 = sbr.rel (%p327) target = $region12
      $region11: #{tpu_custom_call.1} parent=5 // pred_region
        %s331 = ssub.s32 %s29, 1
        // Predicated region
        $region13: #{tpu_custom_call.1} parent=11 // pred_check
          %p332 = pneg %p128
        $region14: #{tpu_custom_call.1} parent=11 // pred_check_branch
          %334 = sbr.rel (%p332) target = $region16
        $region15: #{tpu_custom_call.1} parent=11 // pred_region
          %336 = vsyncadd [#allocation10], 0
          %s338 = sshll.u32 %s3, 4
          %s339 = int_to_ptr.hbm [resolvable:$true] %s338
          %s340 = sshll.u32 [#allocation11], 4
          %s341 = int_to_ptr.vmem [resolvable:$true] %s340
          %343 = dma.hbm_to_vmem [thread:$0]  %s339, 128, %s341, [#allocation10]
        $region16: #{tpu_custom_call.1} parent=11 // pred_fallthru
          _
        // Predicated region
        $region17: #{tpu_custom_call.1} parent=11 // pred_check
          %p344 = pneg %p149
        $region18: #{tpu_custom_call.1} parent=11 // pred_check_branch
          %346 = sbr.rel (%p344) target = $region20
        $region19: #{tpu_custom_call.1} parent=11 // pred_region
          %348 = vsyncadd [#allocation13], 0
          %s350 = sshll.u32 %s4, 4
          %s351 = int_to_ptr.hbm [resolvable:$true] %s350
          %s352 = sshll.u32 [#allocation12], 4
          %s353 = int_to_ptr.vmem [resolvable:$true] %s352
          %355 = dma.hbm_to_vmem [thread:$0]  %s351, 128, %s353, [#allocation13]
        $region20: #{tpu_custom_call.1} parent=11 // pred_fallthru
          _
        // Predicated region
        $region21: #{tpu_custom_call.1} parent=11 // pred_check
          %p356 = pneg %p170
        $region22: #{tpu_custom_call.1} parent=11 // pred_check_branch
          %358 = sbr.rel (%p356) target = $region24
        $region23: #{tpu_custom_call.1} parent=11 // pred_region
          _
        $region24: #{tpu_custom_call.1} parent=11 // pred_fallthru
          _
        // Predicated region
        $region25: #{tpu_custom_call.1} parent=11 // pred_check
          %p359 = pneg %p191
        $region26: #{tpu_custom_call.1} parent=11 // pred_check_branch
          %361 = sbr.rel (%p359) target = $region28
        $region27: #{tpu_custom_call.1} parent=11 // pred_region
          _
        $region28: #{tpu_custom_call.1} parent=11 // pred_fallthru
          _
        // Predicated region
        $region29: #{tpu_custom_call.1} parent=11 // pred_check
          %p362 = pneg %p212
        $region30: #{tpu_custom_call.1} parent=11 // pred_check_branch
          %364 = sbr.rel (%p362) target = $region32
        $region31: #{tpu_custom_call.1} parent=11 // pred_region
          %366 = vsyncadd [#allocation13], 0
          %s367 = sshll.u32 %s7, 4
          %s368 = int_to_ptr.hbm [resolvable:$true] %s367
          %s369 = sshll.u32 [#allocation14], 4
          %s370 = int_to_ptr.vmem [resolvable:$true] %s369
          %375 = dma.hbm_to_vmem [thread:$0]  %s368, 256, %s370, [#allocation13], 128, 128, 8
        $region32: #{tpu_custom_call.1} parent=11 // pred_fallthru
          _
        // Predicated region
        $region33: #{tpu_custom_call.1} parent=11 // pred_check
          %p376 = pneg %p233
        $region34: #{tpu_custom_call.1} parent=11 // pred_check_branch
          %378 = sbr.rel (%p376) target = $region36
        $region35: #{tpu_custom_call.1} parent=11 // pred_region
          _
        $region36: #{tpu_custom_call.1} parent=11 // pred_fallthru
          _
        // Predicated region
        $region37: #{tpu_custom_call.1} parent=11 // pred_check
          %p379 = pneg %p254
        $region38: #{tpu_custom_call.1} parent=11 // pred_check_branch
          %381 = sbr.rel (%p379) target = $region40
        $region39: #{tpu_custom_call.1} parent=11 // pred_region
          _
        $region40: #{tpu_custom_call.1} parent=11 // pred_fallthru
          _
        // Predicated region
        $region41: #{tpu_custom_call.1} parent=11 // pred_check
          %p382 = pneg %p275
        $region42: #{tpu_custom_call.1} parent=11 // pred_check_branch
          %384 = sbr.rel (%p382) target = $region44
        $region43: #{tpu_custom_call.1} parent=11 // pred_region
          %386 = vsyncadd [#allocation16], 0
          %s387 = sshll.u32 %s10, 4
          %s388 = int_to_ptr.hbm [resolvable:$true] %s387
          %s389 = sshll.u32 [#allocation15], 4
          %s390 = int_to_ptr.vmem [resolvable:$true] %s389
          %395 = dma.hbm_to_vmem [thread:$0]  %s388, 512, %s390, [#allocation16], 128, 128, 8
        $region44: #{tpu_custom_call.1} parent=11 // pred_fallthru
          _
      $region12: #{tpu_custom_call.1} parent=5 // pred_fallthru
        _
      %p396 = scmp.lt.s32.totalorder %s29, 3
      // Predicated region
      $region45: #{tpu_custom_call.1} parent=5 // pred_check
        %p397 = pneg %p396
      $region46: #{tpu_custom_call.1} parent=5 // pred_check_branch
        %399 = sbr.rel (%p397) target = $region48
      $region47: #{tpu_custom_call.1} parent=5 // pred_region
        // Predicated region
        $region49: #{tpu_custom_call.1} parent=47 // pred_check
          %p400 = pneg %p49
        $region50: #{tpu_custom_call.1} parent=47 // pred_check_branch
          %402 = sbr.rel (%p400) target = $region52
        $region51: #{tpu_custom_call.1} parent=47 // pred_region
          %s403 = sand.u32 %s39, 1
          %s404 = scalar_lea.sflag [#allocation7], %s403
          %s405 = sand.u32 %s39, 1
          %s406 = smul.addr %s405, 8
          %s407 = scalar_lea.vmem [#allocation6], %s406
          %409 = vsyncadd %s404, 0
          %s410 = smul.addr %s29, 8
          %s411 = scalar_lea.hbm %s0, %s410
          %s413 = sshll.u32 %s411, 4
          %s414 = int_to_ptr.hbm [resolvable:$true] %s413
          %s415 = sshll.u32 %s407, 4
          %s416 = int_to_ptr.vmem [resolvable:$true] %s415
          %418 = dma.hbm_to_vmem [thread:$0]  %s414, 128, %s416, %s404
        $region52: #{tpu_custom_call.1} parent=47 // pred_fallthru
          _
        // Predicated region
        $region53: #{tpu_custom_call.1} parent=47 // pred_check
          %p419 = pneg %p75
        $region54: #{tpu_custom_call.1} parent=47 // pred_check_branch
          %421 = sbr.rel (%p419) target = $region56
        $region55: #{tpu_custom_call.1} parent=47 // pred_region
          %s422 = sand.u32 %s29, 1
          %s423 = scalar_lea.sflag [#allocation10], %s422
          %s424 = sand.u32 %s65, 1
          %s425 = smul.addr %s424, 8
          %s426 = scalar_lea.vmem [#allocation9], %s425
          %428 = vsyncadd %s423, 0
          %s429 = smul.addr %s29, 8
          %s430 = scalar_lea.hbm %s1, %s429
          %s432 = sshll.u32 %s430, 4
          %s433 = int_to_ptr.hbm [resolvable:$true] %s432
          %s434 = sshll.u32 %s426, 4
          %s435 = int_to_ptr.vmem [resolvable:$true] %s434
          %437 = dma.hbm_to_vmem [thread:$0]  %s433, 128, %s435, %s423
        $region56: #{tpu_custom_call.1} parent=47 // pred_fallthru
          _
        // Predicated region
        $region57: #{tpu_custom_call.1} parent=47 // pred_check
          %p438 = pneg %p101
        $region58: #{tpu_custom_call.1} parent=47 // pred_check_branch
          %440 = sbr.rel (%p438) target = $region60
        $region59: #{tpu_custom_call.1} parent=47 // pred_region
          %p441 = scmp.lt.s32.totalorder %s29, 2
          %s442 = scalar_select %p441, %s29, 2
          %s443 = smul.addr %s442, 3
          %s444 = smul.addr %s443, 8
          %s445 = scalar_lea.vmem %s2, %s444
        $region60: #{tpu_custom_call.1} parent=47 // pred_fallthru
          _
      $region48: #{tpu_custom_call.1} parent=5 // pred_fallthru
        _
      %p446 = scmp.le.s32.totalorder 1, %s29
      %p447 = scmp.lt.s32.totalorder %s29, 4
      %p448 = pnand %p446, %p447
      %p449 = pneg %p448
      // Predicated region
      $region61: #{tpu_custom_call.1} parent=5 // pred_check
        _
      $region62: #{tpu_custom_call.1} parent=5 // pred_check_branch
        %451 = sbr.rel (%p448) target = $region64
      $region63: #{tpu_custom_call.1} parent=5 // pred_region
        %s452 = ssub.s32 %s29, 1
        %s453 = sand.u32 %s42, 1
        %s454 = scalar_lea.sflag [#allocation7], %s453
        %s455 = sand.u32 %s42, 1
        %s456 = smul.addr %s455, 8
        %s457 = scalar_lea.vmem [#allocation6], %s456
        // Predicated region
        $region65: #{tpu_custom_call.1} parent=63 // pred_check
          %p458 = pneg %p55
        $region66: #{tpu_custom_call.1} parent=63 // pred_check_branch
          %460 = sbr.rel (%p458) target = $region68
        $region67: #{tpu_custom_call.1} parent=63 // pred_region
          %462 = dma.done %s454, 128
        $region68: #{tpu_custom_call.1} parent=63 // pred_fallthru
          _
        %s463 = sand.u32 %s34, 1
        %s464 = scalar_lea.sflag [#allocation10], %s463
        %s465 = sand.u32 %s68, 1
        %s466 = smul.addr %s465, 8
        %s467 = scalar_lea.vmem [#allocation9], %s466
        // Predicated region
        $region69: #{tpu_custom_call.1} parent=63 // pred_check
          %p468 = pneg %p81
        $region70: #{tpu_custom_call.1} parent=63 // pred_check_branch
          %470 = sbr.rel (%p468) target = $region72
        $region71: #{tpu_custom_call.1} parent=63 // pred_region
          %472 = dma.done %s464, 128
        $region72: #{tpu_custom_call.1} parent=63 // pred_fallthru
          _
        // Predicated region
        $region73: #{tpu_custom_call.1} parent=63 // pred_check
          %p473 = pneg %p128
        $region74: #{tpu_custom_call.1} parent=63 // pred_check_branch
          %475 = sbr.rel (%p473) target = $region76
        $region75: #{tpu_custom_call.1} parent=63 // pred_region
          %477 = dma.done [#allocation10], 128
        $region76: #{tpu_custom_call.1} parent=63 // pred_fallthru
          _
        // Predicated region
        $region77: #{tpu_custom_call.1} parent=63 // pred_check
          %p478 = pneg %p149
        $region78: #{tpu_custom_call.1} parent=63 // pred_check_branch
          %480 = sbr.rel (%p478) target = $region80
        $region79: #{tpu_custom_call.1} parent=63 // pred_region
          %482 = dma.done [#allocation13], 128
        $region80: #{tpu_custom_call.1} parent=63 // pred_fallthru
          _
        // Predicated region
        $region81: #{tpu_custom_call.1} parent=63 // pred_check
          %p483 = pneg %p212
        $region82: #{tpu_custom_call.1} parent=63 // pred_check_branch
          %485 = sbr.rel (%p483) target = $region84
        $region83: #{tpu_custom_call.1} parent=63 // pred_region
          %487 = dma.done [#allocation13], 256
        $region84: #{tpu_custom_call.1} parent=63 // pred_fallthru
          _
        // Predicated region
        $region85: #{tpu_custom_call.1} parent=63 // pred_check
          %p488 = pneg %p275
        $region86: #{tpu_custom_call.1} parent=63 // pred_check_branch
          %490 = sbr.rel (%p488) target = $region88
        $region87: #{tpu_custom_call.1} parent=63 // pred_region
          %492 = dma.done [#allocation16], 512
        $region88: #{tpu_custom_call.1} parent=63 // pred_fallthru
          _
        %s493 = sand.u32 %s42, 1
        %s494 = scalar_lea.sflag [#allocation7], %s493
        %s495 = sand.u32 %s42, 1
        %s496 = smul.addr %s495, 8
        %s497 = scalar_lea.vmem [#allocation6], %s496
        %p498 = pneg %p55
        %p499 = pneg %p52
        %s500 = sand.u32 %s34, 1
        %s501 = scalar_lea.sflag [#allocation10], %s500
        %s502 = sand.u32 %s68, 1
        %s503 = smul.addr %s502, 8
        %s504 = scalar_lea.vmem [#allocation9], %s503
        %p505 = pneg %p81
        %p506 = pneg %p78
        %p507 = scmp.lt.s32.totalorder %s34, 2
        %s508 = scalar_select %p507, %s34, 2
        %s509 = smul.addr %s508, 3
        %s510 = smul.addr %s509, 8
        %s511 = scalar_lea.vmem %s2, %s510
        %p512 = pneg %p107
        %p513 = pneg %p104
        %p514 = pneg %p128
        %p515 = pneg %p125
        %p516 = pneg %p149
        %p517 = pneg %p146
        %p518 = pneg %p170
        %p519 = pneg %p167
        %p520 = pneg %p191
        %p521 = pneg %p188
        %p522 = pneg %p212
        %p523 = pneg %p209
        %p524 = pneg %p233
        %p525 = pneg %p230
        %p526 = pneg %p254
        %p527 = pneg %p251
        %p528 = pneg %p275
        %p529 = pneg %p272
        %p530 = pneg %p296
        %p531 = pneg %p293
        %p532 = pneg %p317
        %p533 = pneg %p314
        %p534 = scmp.lt.s32.totalorder %s34, 2
        %s535 = scalar_select %p534, %s34, 2
        %s536 = smul.addr %s535, 3
        %s537 = smul.addr %s536, 8
        %s538 = scalar_lea.vmem %s2, %s537
        %p539 = scmp.eq.s32.totalorder %s34, 0
        // Predicated region
        $region89: #{tpu_custom_call.1} parent=63 // pred_check
          %p540 = pneg %p539
        $region90: #{tpu_custom_call.1} parent=63 // pred_check_branch
          %542 = sbr.rel (%p540) target = $region92
        $region91: #{tpu_custom_call.1} parent=63 // pred_region
          %v543 = vld [vmem:[#allocation11] sm:$0xff]
          %v544 = vld [vmem:[%s5] sm:$0xff]
          %v545 = vld [vmem:[%s5 + $0x8] sm:$0xff]
          %v546 = vld [vmem:[%s5 + $0x10] sm:$0xff]
          %v547 = vld [vmem:[%s5 + $0x18] sm:$0xff]
          %v548 = vld [vmem:[%s6] sm:$0x1]
          %v550 = vperm.slane %v548, 0
          %vm552 = vcmask 261120
          %v554 = vsel %vm552, %v543, 0
          %556 = vmatpush.msra.mxu0 0.0
          %557 = vmatpush.msra.mxu0 0.0
          %558 = vmatpush.msra.mxu0 0.0
          %559 = vmatpush.msra.mxu0 0.0
          %560 = vmatpush.msra.mxu0 0.0
          %561 = vmatpush.msra.mxu0 0.0
          %562 = vmatpush.msra.mxu0 0.0
          %563 = vmatpush.msra.mxu0 0.0
          %564 = vmatpush.msra.mxu0 0.0
          %565 = vmatpush.msra.mxu0 0.0
          %566 = vmatpush.msra.mxu0 0.0
          %567 = vmatpush.msra.mxu0 0.0
          %568 = vmatpush.msra.mxu0 %v547
          %569 = vmatpush.msra.mxu0 %v546
          %570 = vmatpush.msra.mxu0 %v545
          %571 = vmatpush.msra.mxu0 %v544
          %572 = vmatmul.f32.gmra.mxu0 %v554
          %v573 = vpop.f32.mrf.mxu0
          %v574 = vadd.f32 %v550, %v573
          %575 = vdwg.mxu0
          %576 = vst [vmem:[#allocation2] sm:$0xff] %v574
          %v577 = vld [vmem:[#allocation12] sm:$0xff]
          %v578 = vld [vmem:[#allocation14] sm:$0xff]
          %v579 = vld [vmem:[#allocation14 + $0x8] sm:$0xff]
          %vm580 = vcmask 130048
          %v582 = vsel %vm580, %v577, 0
          %584 = vmatpush.msra.mxu0 0.0
          %585 = vmatpush.msra.mxu0 0.0
          %586 = vmatpush.msra.mxu0 0.0
          %587 = vmatpush.msra.mxu0 0.0
          %588 = vmatpush.msra.mxu0 0.0
          %589 = vmatpush.msra.mxu0 0.0
          %590 = vmatpush.msra.mxu0 0.0
          %591 = vmatpush.msra.mxu0 0.0
          %592 = vmatpush.msra.mxu0 0.0
          %593 = vmatpush.msra.mxu0 0.0
          %594 = vmatpush.msra.mxu0 0.0
          %595 = vmatpush.msra.mxu0 0.0
          %596 = vmatpush.msra.mxu0 0.0
          %597 = vmatpush.msra.mxu0 0.0
          %598 = vmatpush.msra.mxu0 %v579
          %599 = vmatpush.msra.mxu0 %v578
          %600 = vmatmul.f32.gmra.mxu0 %v582
          %v601 = vpop.f32.mrf.mxu0
          %v602 = vadd.f32 0.0, %v601
          %603 = vdwg.mxu0
          %604 = vst.msk [vmem:[#allocation3] sm:$0xff] %vm552, %v602
          %605 = vst.msk [vmem:[#allocation4] sm:$0xff] %vm552, 0.0
          %606 = vst.msk [vmem:[#allocation5] sm:$0xff] %vm552, 0.0
        $region92: #{tpu_custom_call.1} parent=63 // pred_fallthru
          _
        %v607 = vld [vmem:[%s457] sm:$0xff]
        %v608 = vld [vmem:[%s538] sm:$0xff]
        %v609 = vld [vmem:[%s538 + $0x8] sm:$0xff]
        %v610 = vld [vmem:[%s538 + $0x10] sm:$0xff]
        %v611 = vld [vmem:[#allocation2] sm:$0xff]
        %vm612 = vcmask 64512
        %v614 = vsel %vm612, %v607, 0
        %616 = vmatpush.msra.mxu0 0.0
        %617 = vmatpush.msra.mxu0 0.0
        %618 = vmatpush.msra.mxu0 0.0
        %619 = vmatpush.msra.mxu0 0.0
        %620 = vmatpush.msra.mxu0 0.0
        %621 = vmatpush.msra.mxu0 0.0
        %622 = vmatpush.msra.mxu0 0.0
        %623 = vmatpush.msra.mxu0 0.0
        %624 = vmatpush.msra.mxu0 0.0
        %625 = vmatpush.msra.mxu0 0.0
        %626 = vmatpush.msra.mxu0 0.0
        %627 = vmatpush.msra.mxu0 0.0
        %628 = vmatpush.msra.mxu0 0.0
        %629 = vmatpush.msra.mxu0 0.0
        %630 = vmatpush.msra.mxu0 0.0
        %631 = vmatpush.msra.mxu0 %v611
        %632 = vmatmul.f32.gmra.mxu0 %v614
        %v633 = vpop.f32.mrf.mxu0
        %v634 = vadd.f32 0.0, %v633
        %635 = vdwg.mxu0
        %v636 = vld [vmem:[#allocation4] sm:$0xff]
        %v638 = vsel %vm612, %v608, 0
        %v641 = vsel %vm612, %v609, 0
        %v644 = vsel %vm612, %v610, 0
        %646 = vmatpush.msra.mxu0 0.0
        %647 = vmatpush.msra.mxu0 0.0
        %648 = vmatpush.msra.mxu0 0.0
        %649 = vmatpush.msra.mxu0 0.0
        %650 = vmatpush.msra.mxu0 0.0
        %651 = vmatpush.msra.mxu0 0.0
        %652 = vmatpush.msra.mxu0 0.0
        %653 = vmatpush.msra.mxu0 0.0
        %654 = vmatpush.msra.mxu0 0.0
        %655 = vmatpush.msra.mxu0 0.0
        %656 = vmatpush.msra.mxu0 0.0
        %657 = vmatpush.msra.mxu0 0.0
        %658 = vmatpush.msra.mxu0 0.0
        %659 = vmatpush.msra.mxu0 0.0
        %660 = vmatpush.msra.mxu0 0.0
        %661 = vmatpush.msra.mxu0 %v636
        %662 = vmatmul.f32.gmra.mxu0 %v638
        %v663 = vpop.f32.mrf.mxu0
        %v664 = vadd.f32 0.0, %v663
        %665 = vmatmul.f32.gmra.mxu0 %v641
        %v666 = vpop.f32.mrf.mxu0
        %v667 = vadd.f32 0.0, %v666
        %668 = vmatmul.f32.gmra.mxu0 %v644
        %v669 = vpop.f32.mrf.mxu0
        %v670 = vadd.f32 0.0, %v669
        %671 = vdwg.mxu0
        %v672 = vld [vmem:[#allocation5] sm:$0xff]
        %673 = vmatpush.msra.mxu0 0.0
        %674 = vmatpush.msra.mxu0 0.0
        %675 = vmatpush.msra.mxu0 0.0
        %676 = vmatpush.msra.mxu0 0.0
        %677 = vmatpush.msra.mxu0 0.0
        %678 = vmatpush.msra.mxu0 0.0
        %679 = vmatpush.msra.mxu0 0.0
        %680 = vmatpush.msra.mxu0 0.0
        %681 = vmatpush.msra.mxu0 0.0
        %682 = vmatpush.msra.mxu0 0.0
        %683 = vmatpush.msra.mxu0 0.0
        %684 = vmatpush.msra.mxu0 0.0
        %685 = vmatpush.msra.mxu0 0.0
        %686 = vmatpush.msra.mxu0 0.0
        %687 = vmatpush.msra.mxu0 0.0
        %688 = vmatpush.msra.mxu0 %v672
        %689 = vmatmul.f32.gmra.mxu0 %v638
        %v690 = vpop.f32.mrf.mxu0
        %v691 = vadd.f32 0.0, %v690
        %692 = vmatmul.f32.gmra.mxu0 %v641
        %v693 = vpop.f32.mrf.mxu0
        %v694 = vadd.f32 0.0, %v693
        %695 = vmatmul.f32.gmra.mxu0 %v644
        %v696 = vpop.f32.mrf.mxu0
        %v697 = vadd.f32 0.0, %v696
        %698 = vdwg.mxu0
        %v699 = vld [vmem:[#allocation3] sm:$0xff]
        %700 = vmatpush.msra.mxu0 0.0
        %701 = vmatpush.msra.mxu0 0.0
        %702 = vmatpush.msra.mxu0 0.0
        %703 = vmatpush.msra.mxu0 0.0
        %704 = vmatpush.msra.mxu0 0.0
        %705 = vmatpush.msra.mxu0 0.0
        %706 = vmatpush.msra.mxu0 0.0
        %707 = vmatpush.msra.mxu0 0.0
        %708 = vmatpush.msra.mxu0 0.0
        %709 = vmatpush.msra.mxu0 0.0
        %710 = vmatpush.msra.mxu0 0.0
        %711 = vmatpush.msra.mxu0 0.0
        %712 = vmatpush.msra.mxu0 0.0
        %713 = vmatpush.msra.mxu0 0.0
        %714 = vmatpush.msra.mxu0 0.0
        %715 = vmatpush.msra.mxu0 %v699
        %716 = vmatmul.f32.gmra.mxu0 %v638
        %v717 = vpop.f32.mrf.mxu0
        %v718 = vadd.f32 0.0, %v717
        %719 = vmatmul.f32.gmra.mxu0 %v641
        %v720 = vpop.f32.mrf.mxu0
        %v721 = vadd.f32 0.0, %v720
        %722 = vmatmul.f32.gmra.mxu0 %v644
        %v723 = vpop.f32.mrf.mxu0
        %v724 = vadd.f32 0.0, %v723
        %725 = vdwg.mxu0
        %v726 = vld [vmem:[%s8] sm:$0xff]
        %v727 = vld [vmem:[%s8 + $0x8] sm:$0xff]
        %v728 = vld [vmem:[%s8 + $0x10] sm:$0xff]
        %v729 = vld [vmem:[%s8 + $0x18] sm:$0xff]
        %vm730 = vcmask 261120
        %v732 = vsel %vm730, %v691, 0
        %v735 = vsel %vm730, %v694, 0
        %v738 = vsel %vm730, %v697, 0
        %740 = vmatpush.msra.mxu0 0.0
        %741 = vmatpush.msra.mxu0 0.0
        %742 = vmatpush.msra.mxu0 0.0
        %743 = vmatpush.msra.mxu0 0.0
        %744 = vmatpush.msra.mxu0 0.0
        %745 = vmatpush.msra.mxu0 0.0
        %746 = vmatpush.msra.mxu0 0.0
        %747 = vmatpush.msra.mxu0 0.0
        %748 = vmatpush.msra.mxu0 0.0
        %749 = vmatpush.msra.mxu0 0.0
        %750 = vmatpush.msra.mxu0 0.0
        %751 = vmatpush.msra.mxu0 0.0
        %752 = vmatpush.msra.mxu0 %v729
        %753 = vmatpush.msra.mxu0 %v728
        %754 = vmatpush.msra.mxu0 %v727
        %755 = vmatpush.msra.mxu0 %v726
        %756 = vmatmul.f32.gmra.mxu0 %v732
        %v757 = vpop.f32.mrf.mxu0
        %v758 = vadd.f32 0.0, %v757
        %759 = vmatmul.f32.gmra.mxu0 %v735
        %v760 = vpop.f32.mrf.mxu0
        %v761 = vadd.f32 0.0, %v760
        %762 = vmatmul.f32.gmra.mxu0 %v738
        %v763 = vpop.f32.mrf.mxu0
        %v764 = vadd.f32 0.0, %v763
        %765 = vdwg.mxu0
        %v766 = vmul.f32 %v718, %v758
        %v767 = vmul.f32 %v721, %v761
        %v768 = vmul.f32 %v724, %v764
        %v769 = vld [vmem:[%s9] sm:$0xff]
        %v770 = vld [vmem:[%s9 + $0x8] sm:$0xff]
        %v771 = vld [vmem:[%s9 + $0x10] sm:$0xff]
        %v772 = vld [vmem:[%s9 + $0x18] sm:$0xff]
        %v774 = vsel %vm730, %v766, 0
        %v777 = vsel %vm730, %v767, 0
        %v780 = vsel %vm730, %v768, 0
        %782 = vmatpush.msra.mxu0 0.0
        %783 = vmatpush.msra.mxu0 0.0
        %784 = vmatpush.msra.mxu0 0.0
        %785 = vmatpush.msra.mxu0 0.0
        %786 = vmatpush.msra.mxu0 0.0
        %787 = vmatpush.msra.mxu0 0.0
        %788 = vmatpush.msra.mxu0 0.0
        %789 = vmatpush.msra.mxu0 0.0
        %790 = vmatpush.msra.mxu0 0.0
        %791 = vmatpush.msra.mxu0 0.0
        %792 = vmatpush.msra.mxu0 0.0
        %793 = vmatpush.msra.mxu0 0.0
        %794 = vmatpush.msra.mxu0 %v772
        %795 = vmatpush.msra.mxu0 %v771
        %796 = vmatpush.msra.mxu0 %v770
        %797 = vmatpush.msra.mxu0 %v769
        %798 = vmatmul.f32.gmra.mxu0 %v774
        %v799 = vpop.f32.mrf.mxu0
        %v800 = vadd.f32 0.0, %v799
        %801 = vmatmul.f32.gmra.mxu0 %v777
        %v802 = vpop.f32.mrf.mxu0
        %v803 = vadd.f32 0.0, %v802
        %804 = vmatmul.f32.gmra.mxu0 %v780
        %v805 = vpop.f32.mrf.mxu0
        %v806 = vadd.f32 0.0, %v805
        %807 = vdwg.mxu0
        %v808 = vlaneseq
        %v809 = vshrl.u32 %v808, 7
        %v810 = vlaneseq
        %v811 = vand.u32 %v810, 127
        %v812 = vmul.u32 %v809, 3
        %vm813 = vcmp.ge.s32.totalorder %v811, %v812
        %v814 = vadd.s32 %v809, 1
        %v815 = vmul.u32 %v814, 3
        %vm816 = vcmp.lt.s32.totalorder %v811, %v815
        %vm817 = vmand %vm813, %vm816
        %v818 = vsel %vm817, 1, 0
        %v819 = vcvt.s32.f32 %v818
        %v820 = vadd.s32 %v809, 8
        %v821 = vadd.s32 %v809, 16
        %v822 = vmul.u32 %v811, 3
        %vm823 = vcmp.ge.s32.totalorder %v809, %v822
        %vm824 = vcmp.ge.s32.totalorder %v820, %v822
        %vm825 = vcmp.ge.s32.totalorder %v821, %v822
        %v826 = vadd.s32 %v811, 1
        %v827 = vmul.u32 %v826, 3
        %vm828 = vcmp.lt.s32.totalorder %v809, %v827
        %vm829 = vcmp.lt.s32.totalorder %v820, %v827
        %vm830 = vcmp.lt.s32.totalorder %v821, %v827
        %vm831 = vmand %vm823, %vm828
        %vm832 = vmand %vm824, %vm829
        %vm833 = vmand %vm825, %vm830
        %v834 = vsel %vm831, 1, 0
        %v835 = vsel %vm832, 1, 0
        %v836 = vsel %vm833, 1, 0
        %v837 = vcvt.s32.f32 %v834
        %v838 = vcvt.s32.f32 %v835
        %v839 = vcvt.s32.f32 %v836
        %vm840 = vcmask 195584
        %v842 = vsel %vm840, %v819, 0
        %844 = vmatpush.msra.mxu0 0.0
        %845 = vmatpush.msra.mxu0 0.0
        %846 = vmatpush.msra.mxu0 0.0
        %847 = vmatpush.msra.mxu0 0.0
        %848 = vmatpush.msra.mxu0 0.0
        %849 = vmatpush.msra.mxu0 0.0
        %850 = vmatpush.msra.mxu0 0.0
        %851 = vmatpush.msra.mxu0 0.0
        %852 = vmatpush.msra.mxu0 0.0
        %853 = vmatpush.msra.mxu0 0.0
        %854 = vmatpush.msra.mxu0 0.0
        %855 = vmatpush.msra.mxu0 0.0
        %856 = vmatpush.msra.mxu0 0.0
        %857 = vmatpush.msra.mxu0 %v806
        %858 = vmatpush.msra.mxu0 %v803
        %859 = vmatpush.msra.mxu0 %v800
        %860 = vmatmul.f32.gmra.mxu0 %v842
        %v861 = vpop.f32.mrf.mxu0
        %v862 = vadd.f32 0.0, %v861
        %863 = vdwg.mxu0
        %v864 = vld [vmem:[#allocation15] sm:$0xff]
        %v865 = vld [vmem:[#allocation15 + $0x8] sm:$0xff]
        %v866 = vld [vmem:[#allocation15 + $0x10] sm:$0xff]
        %v867 = vld [vmem:[#allocation15 + $0x18] sm:$0xff]
        %v869 = vsel %vm730, %v862, 0
        %871 = vmatpush.msra.mxu0 0.0
        %872 = vmatpush.msra.mxu0 0.0
        %873 = vmatpush.msra.mxu0 0.0
        %874 = vmatpush.msra.mxu0 0.0
        %875 = vmatpush.msra.mxu0 0.0
        %876 = vmatpush.msra.mxu0 0.0
        %877 = vmatpush.msra.mxu0 0.0
        %878 = vmatpush.msra.mxu0 0.0
        %879 = vmatpush.msra.mxu0 0.0
        %880 = vmatpush.msra.mxu0 0.0
        %881 = vmatpush.msra.mxu0 0.0
        %882 = vmatpush.msra.mxu0 0.0
        %883 = vmatpush.msra.mxu0 %v867
        %884 = vmatpush.msra.mxu0 %v866
        %885 = vmatpush.msra.mxu0 %v865
        %886 = vmatpush.msra.mxu0 %v864
        %887 = vmatmul.f32.gmra.mxu0 %v869
        %v888 = vpop.f32.mrf.mxu0
        %v889 = vadd.f32 %v634, %v888
        %890 = vdwg.mxu0
        %v891 = vxor.u32 %v889, 2147483648
        %v892 = vmul.f32 %v891, 1.442695
        %v893 = vpow.pop %v892
        %v894 = vadd.f32 %v893, 1.0
        %v895 = vrcp.pop %v894
        %v896 = vmul.f32 %v894, %v895
        %v897 = vsub.f32 1.0, %v896
        %v898 = vmul.f32 %v895, %v897
        %v899 = vadd.f32 %v895, %v898
        %vm900 = vweird.f32 %v894
        %vm901 = vweird.f32 %v895
        %vm902 = vmor %vm900, %vm901
        %v903 = vsel %vm902, %v895, %v899
        %v904 = vand.u32 2147483647, %v894
        %vm905 = vcmp.eq.f32.partialorder %v904, 8.507059e+37
        %v906 = vand.u32 %v894, 2147483648
        %v907 = vor.u32 1.1754944e-38, %v906
        %v908 = vsel %vm905, %v907, %v903
        %v909 = vmul.f32 1.0, %v908
        %v910 = vtanh.pop %v889
        %912 = vrot.lane.b32.xlu0 %v634, 32
        %v913 = vpop.permute.xlu0 %912
        %v916 = vsel %vm612, %v837, 0
        %v919 = vsel %vm612, %v838, 0
        %v922 = vsel %vm612, %v839, 0
        %924 = vmatpush.msra.mxu0 0.0
        %925 = vmatpush.msra.mxu0 0.0
        %926 = vmatpush.msra.mxu0 0.0
        %927 = vmatpush.msra.mxu0 0.0
        %928 = vmatpush.msra.mxu0 0.0
        %929 = vmatpush.msra.mxu0 0.0
        %930 = vmatpush.msra.mxu0 0.0
        %931 = vmatpush.msra.mxu0 0.0
        %932 = vmatpush.msra.mxu0 0.0
        %933 = vmatpush.msra.mxu0 0.0
        %934 = vmatpush.msra.mxu0 0.0
        %935 = vmatpush.msra.mxu0 0.0
        %936 = vmatpush.msra.mxu0 0.0
        %937 = vmatpush.msra.mxu0 0.0
        %938 = vmatpush.msra.mxu0 0.0
        %939 = vmatpush.msra.mxu0 %v913
        %940 = vmatmul.f32.gmra.mxu0 %v916
        %v941 = vpop.f32.mrf.mxu0
        %v942 = vadd.f32 0.0, %v941
        %943 = vmatmul.f32.gmra.mxu0 %v919
        %v944 = vpop.f32.mrf.mxu0
        %v945 = vadd.f32 0.0, %v944
        %946 = vmatmul.f32.gmra.mxu0 %v922
        %v947 = vpop.f32.mrf.mxu0
        %v948 = vadd.f32 0.0, %v947
        %949 = vdwg.mxu0
        %953 = vrot.lane.b32.xlu0 %v942, 32
        %v954 = vpop.permute.xlu0 %953
        %955 = vrot.lane.b32.xlu0 %v945, 32
        %v956 = vpop.permute.xlu0 %955
        %957 = vrot.lane.b32.xlu0 %v948, 32
        %v958 = vpop.permute.xlu0 %957
        %v962 = vadd.f32 %v758, %v954
        %v963 = vadd.f32 %v761, %v956
        %v964 = vadd.f32 %v764, %v958
        %v965 = vxor.u32 %v962, 2147483648
        %v966 = vxor.u32 %v963, 2147483648
        %v967 = vxor.u32 %v964, 2147483648
        %v968 = vmul.f32 %v965, 1.442695
        %v969 = vpow.pop %v968
        %v970 = vmul.f32 %v966, 1.442695
        %v971 = vpow.pop %v970
        %v972 = vmul.f32 %v967, 1.442695
        %v973 = vpow.pop %v972
        %v974 = vadd.f32 %v969, 1.0
        %v975 = vadd.f32 %v971, 1.0
        %v976 = vadd.f32 %v973, 1.0
        %v977 = vrcp.pop %v974
        %v978 = vmul.f32 %v974, %v977
        %v979 = vsub.f32 1.0, %v978
        %v980 = vmul.f32 %v977, %v979
        %v981 = vadd.f32 %v977, %v980
        %vm982 = vweird.f32 %v974
        %vm983 = vweird.f32 %v977
        %vm984 = vmor %vm982, %vm983
        %v985 = vsel %vm984, %v977, %v981
        %v986 = vand.u32 2147483647, %v974
        %vm987 = vcmp.eq.f32.partialorder %v986, 8.507059e+37
        %v988 = vand.u32 %v974, 2147483648
        %v989 = vor.u32 1.1754944e-38, %v988
        %v990 = vsel %vm987, %v989, %v985
        %v991 = vmul.f32 1.0, %v990
        %v992 = vrcp.pop %v975
        %v993 = vmul.f32 %v975, %v992
        %v994 = vsub.f32 1.0, %v993
        %v995 = vmul.f32 %v992, %v994
        %v996 = vadd.f32 %v992, %v995
        %vm997 = vweird.f32 %v975
        %vm998 = vweird.f32 %v992
        %vm999 = vmor %vm997, %vm998
        %v1000 = vsel %vm999, %v992, %v996
        %v1001 = vand.u32 2147483647, %v975
        %vm1002 = vcmp.eq.f32.partialorder %v1001, 8.507059e+37
        %v1003 = vand.u32 %v975, 2147483648
        %v1004 = vor.u32 1.1754944e-38, %v1003
        %v1005 = vsel %vm1002, %v1004, %v1000
        %v1006 = vmul.f32 1.0, %v1005
        %v1007 = vrcp.pop %v976
        %v1008 = vmul.f32 %v976, %v1007
        %v1009 = vsub.f32 1.0, %v1008
        %v1010 = vmul.f32 %v1007, %v1009
        %v1011 = vadd.f32 %v1007, %v1010
        %vm1012 = vweird.f32 %v976
        %vm1013 = vweird.f32 %v1007
        %vm1014 = vmor %vm1012, %vm1013
        %v1015 = vsel %vm1014, %v1007, %v1011
        %v1016 = vand.u32 2147483647, %v976
        %vm1017 = vcmp.eq.f32.partialorder %v1016, 8.507059e+37
        %v1018 = vand.u32 %v976, 2147483648
        %v1019 = vor.u32 1.1754944e-38, %v1018
        %v1020 = vsel %vm1017, %v1019, %v1015
        %v1021 = vmul.f32 1.0, %v1020
        %1025 = vrot.lane.b32.xlu0 %v664, 32
        %v1026 = vpop.permute.xlu0 %1025
        %1027 = vrot.lane.b32.xlu0 %v667, 32
        %v1028 = vpop.permute.xlu0 %1027
        %1029 = vrot.lane.b32.xlu0 %v670, 32
        %v1030 = vpop.permute.xlu0 %1029
        %v1034 = vmul.f32 %v991, %v1026
        %v1035 = vmul.f32 %v1006, %v1028
        %v1036 = vmul.f32 %v1021, %v1030
        %1040 = vrot.lane.b32.xlu0 %v1034, 96
        %v1041 = vpop.permute.xlu0 %1040
        %1042 = vrot.lane.b32.xlu0 %v1035, 96
        %v1043 = vpop.permute.xlu0 %1042
        %1044 = vrot.lane.b32.xlu0 %v1036, 96
        %v1045 = vpop.permute.xlu0 %1044
        %1049 = vmatpush.msra.mxu0 0.0
        %1050 = vmatpush.msra.mxu0 0.0
        %1051 = vmatpush.msra.mxu0 0.0
        %1052 = vmatpush.msra.mxu0 0.0
        %1053 = vmatpush.msra.mxu0 0.0
        %1054 = vmatpush.msra.mxu0 0.0
        %1055 = vmatpush.msra.mxu0 0.0
        %1056 = vmatpush.msra.mxu0 0.0
        %1057 = vmatpush.msra.mxu0 0.0
        %1058 = vmatpush.msra.mxu0 0.0
        %1059 = vmatpush.msra.mxu0 0.0
        %1060 = vmatpush.msra.mxu0 0.0
        %1061 = vmatpush.msra.mxu0 0.0
        %1062 = vmatpush.msra.mxu0 %v1045
        %1063 = vmatpush.msra.mxu0 %v1043
        %1064 = vmatpush.msra.mxu0 %v1041
        %1065 = vmatmul.f32.gmra.mxu0 %v842
        %v1066 = vpop.f32.mrf.mxu0
        %v1067 = vadd.f32 0.0, %v1066
        %1068 = vdwg.mxu0
        %1070 = vrot.lane.b32.xlu0 %v910, 64
        %v1071 = vpop.permute.xlu0 %1070
        %v1073 = vmul.f32 %v909, %v1071
        %v1074 = vadd.f32 %v1073, %v1067
        %v1075 = vtanh.pop %v1074
        %1077 = vrot.lane.b32.xlu0 %v1075, 32
        %v1078 = vpop.permute.xlu0 %1077
        %v1080 = vmul.f32 %v909, %v1078
        %v1081 = vld [vmem:[%s467] sm:$0xff]
        %v1083 = vsel %vm612, %v1081, 0
        %1085 = vmatpush.msra.mxu0 0.0
        %1086 = vmatpush.msra.mxu0 0.0
        %1087 = vmatpush.msra.mxu0 0.0
        %1088 = vmatpush.msra.mxu0 0.0
        %1089 = vmatpush.msra.mxu0 0.0
        %1090 = vmatpush.msra.mxu0 0.0
        %1091 = vmatpush.msra.mxu0 0.0
        %1092 = vmatpush.msra.mxu0 0.0
        %1093 = vmatpush.msra.mxu0 0.0
        %1094 = vmatpush.msra.mxu0 0.0
        %1095 = vmatpush.msra.mxu0 0.0
        %1096 = vmatpush.msra.mxu0 0.0
        %1097 = vmatpush.msra.mxu0 0.0
        %1098 = vmatpush.msra.mxu0 0.0
        %1099 = vmatpush.msra.mxu0 0.0
        %1100 = vmatpush.msra.mxu0 %v1074
        %1101 = vmatmul.f32.gmra.mxu0 %v1083
        %v1102 = vpop.f32.mrf.mxu0
        %v1103 = vadd.f32 0.0, %v1102
        %1104 = vdwg.mxu0
        %v1105 = vadd.f32 %v636, %v1103
        %1106 = vst.msk [vmem:[#allocation4] sm:$0xff] %vm730, %v1105
        %v1107 = vld [vmem:[#allocation5] sm:$0xff]
        %v1108 = vld [vmem:[%s467] sm:$0xff]
        %1110 = vrot.lane.b32.xlu0 %v1080, 96
        %v1111 = vpop.permute.xlu0 %1110
        %v1114 = vsel %vm612, %v1108, 0
        %1116 = vmatpush.msra.mxu0 0.0
        %1117 = vmatpush.msra.mxu0 0.0
        %1118 = vmatpush.msra.mxu0 0.0
        %1119 = vmatpush.msra.mxu0 0.0
        %1120 = vmatpush.msra.mxu0 0.0
        %1121 = vmatpush.msra.mxu0 0.0
        %1122 = vmatpush.msra.mxu0 0.0
        %1123 = vmatpush.msra.mxu0 0.0
        %1124 = vmatpush.msra.mxu0 0.0
        %1125 = vmatpush.msra.mxu0 0.0
        %1126 = vmatpush.msra.mxu0 0.0
        %1127 = vmatpush.msra.mxu0 0.0
        %1128 = vmatpush.msra.mxu0 0.0
        %1129 = vmatpush.msra.mxu0 0.0
        %1130 = vmatpush.msra.mxu0 0.0
        %1131 = vmatpush.msra.mxu0 %v1111
        %1132 = vmatmul.f32.gmra.mxu0 %v1114
        %v1133 = vpop.f32.mrf.mxu0
        %v1134 = vadd.f32 0.0, %v1133
        %1135 = vdwg.mxu0
        %v1136 = vadd.f32 %v1107, %v1134
        %1137 = vst.msk [vmem:[#allocation5] sm:$0xff] %vm730, %v1136
        %p1138 = scmp.eq.s32.totalorder %s34, 2
        // Predicated region
        $region93: #{tpu_custom_call.1} parent=63 // pred_check
          %p1139 = pneg %p1138
        $region94: #{tpu_custom_call.1} parent=63 // pred_check_branch
          %1141 = sbr.rel (%p1139) target = $region96
        $region95: #{tpu_custom_call.1} parent=63 // pred_region
          %v1142 = vld [vmem:[#allocation4] sm:$0xff]
          %1143 = vst.msk [vmem:[#allocation17] sm:$0xff] %vm730, %v1142
          %v1144 = vld [vmem:[#allocation5] sm:$0xff]
          %1145 = vst.msk [vmem:[#allocation18] sm:$0xff] %vm730, %v1144
        $region96: #{tpu_custom_call.1} parent=63 // pred_fallthru
          _
        // Predicated region
        $region97: #{tpu_custom_call.1} parent=63 // pred_check
          %p1146 = pneg %p293
        $region98: #{tpu_custom_call.1} parent=63 // pred_check_branch
          %1148 = sbr.rel (%p1146) target = $region100
        $region99: #{tpu_custom_call.1} parent=63 // pred_region
          %1150 = vsyncadd [#allocation8], 0
          %s1152 = sshll.u32 [#allocation17], 4
          %s1153 = int_to_ptr.vmem [resolvable:$true] %s1152
          %s1154 = sshll.u32 %s11, 4
          %s1155 = int_to_ptr.hbm [resolvable:$true] %s1154
          %1157 = dma.vmem_to_hbm [thread:$0]  %s1153, 128, %s1155, [#allocation8]
        $region100: #{tpu_custom_call.1} parent=63 // pred_fallthru
          _
        // Predicated region
        $region101: #{tpu_custom_call.1} parent=63 // pred_check
          %p1158 = pneg %p314
        $region102: #{tpu_custom_call.1} parent=63 // pred_check_branch
          %1160 = sbr.rel (%p1158) target = $region104
        $region103: #{tpu_custom_call.1} parent=63 // pred_region
          %1162 = vsyncadd [#allocation19], 0
          %s1164 = sshll.u32 [#allocation18], 4
          %s1165 = int_to_ptr.vmem [resolvable:$true] %s1164
          %s1166 = sshll.u32 %s12, 4
          %s1167 = int_to_ptr.hbm [resolvable:$true] %s1166
          %1169 = dma.vmem_to_hbm [thread:$0]  %s1165, 128, %s1167, [#allocation19]
        $region104: #{tpu_custom_call.1} parent=63 // pred_fallthru
          _
        // Predicated region
        $region105: #{tpu_custom_call.1} parent=63 // pred_check
          %p1170 = pneg %p293
        $region106: #{tpu_custom_call.1} parent=63 // pred_check_branch
          %1172 = sbr.rel (%p1170) target = $region108
        $region107: #{tpu_custom_call.1} parent=63 // pred_region
          %1174 = dma.done [#allocation8], 128
        $region108: #{tpu_custom_call.1} parent=63 // pred_fallthru
          _
        // Predicated region
        $region109: #{tpu_custom_call.1} parent=63 // pred_check
          %p1175 = pneg %p314
        $region110: #{tpu_custom_call.1} parent=63 // pred_check_branch
          %1177 = sbr.rel (%p1175) target = $region112
        $region111: #{tpu_custom_call.1} parent=63 // pred_region
          %1179 = dma.done [#allocation19], 128
        $region112: #{tpu_custom_call.1} parent=63 // pred_fallthru
          _
      $region64: #{tpu_custom_call.1} parent=5 // pred_fallthru
        _
      %p1180 = scmp.le.s32.totalorder 2, %s29
      // Predicated region
      $region113: #{tpu_custom_call.1} parent=5 // pred_check
        %p1181 = pneg %p1180
      $region114: #{tpu_custom_call.1} parent=5 // pred_check_branch
        %1183 = sbr.rel (%p1181) target = $region116
      $region115: #{tpu_custom_call.1} parent=5 // pred_region
        %s1184 = ssub.s32 %s29, 2
      $region116: #{tpu_custom_call.1} parent=5 // pred_fallthru
        _
    $region6: #{tpu_custom_call.1} parent=1 // loop_footer
      %s33 = sadd.s32 1, %s29
    $region7: #{tpu_custom_call.1} parent=1 // loop_footer_branch
      %28 = sbr.rel target = $region3
    $region8: #{tpu_custom_call.1} parent=1 // loop_exit
      _
    %1185 = vsyncpa [#allocation7], 1
    %s1186 = scalar_lea.sflag [#allocation7], 1
    %1187 = vsyncpa %s1186, 1
    %1188 = vsyncpa [#allocation10], 1
    %s1189 = scalar_lea.sflag [#allocation10], 1
    %1190 = vsyncpa %s1189, 1
    %1191 = vsyncpa [#allocation13], 1
    %1192 = vsyncpa [#allocation16], 1
    %1193 = vsyncpa [#allocation8], 1
    %s1194 = scalar_lea.sflag [#allocation8], 1
    %1195 = vsyncpa %s1194, 1
    %1196 = vsyncpa [#allocation19], 1

</llo_original>
